<compile_context>
chip_gen: v7x
topology: tpu7x:2x2x1
jax: 0.10.0
libtpu: 0.0.40
codegen_flags: <defaults>
</compile_context>

<pallas_src>
import math

import jax
import jax.numpy as jnp
import numpy as np
from jax import lax
from jax.experimental import pallas as pl
from jax.experimental.pallas import tpu as pltpu

# ----------------------------- configuration (small shapes) -----------------------------
B = 2              # batch
F_IN = 2           # feature_in
V_IN = 8           # V_grad_in (input gradient directions)
S_IN = 1           # number of shells (kernel assumes S_IN == 1, see TODO below)
C_IN = 8           # input SH coefficients
X = Y = Z = 4
N_VOX = X * Y * Z
V_GRID = 16        # graphSampling.sampling.vectors.shape[0]
C_SH = 8           # SH coefficients of the graph sampling (SH2S rows / S2SH cols)
FILTER_START = 8
K_SPH = 3          # kernel_sizeSph (Chebyshev order)
N_EQUI = 2
N_INVA = 1
OUT_CH = N_EQUI + N_INVA        # conv_name='spherical', keepSphericalDim -> no V mult
NORMALIZE = True
EPS = 1e-16
MIN_C = min(C_IN, C_SH)
CIN_UNET = F_IN * S_IN
SQRT_4PI = math.sqrt(4.0 * math.pi)

# derived layout constants (column layout: rows = feature dims, lanes = B*N_vox)
CIN_V_IN = CIN_UNET * V_IN               # 16
KDIM_IN = B * CIN_V_IN                   # 32  stage-1 contraction (batch folded in)
LANE_X = CIN_UNET * V_GRID               # 32  layer-1 activation rows
FS_V = FILTER_START * V_GRID             # 128 layer-2 activation rows
LANE_O = N_EQUI * C_SH + N_INVA * V_GRID  # 32  layer-2 output rows (equi SHC + inva grid)
OUT_ROWS = N_EQUI * C_SH + N_INVA        # 17  merged output rows
WIDE_LANES = max(FS_V, B * N_VOX)        # 128
NARROW_LANES = max(KDIM_IN, LANE_X)      # 32

# packed-slab row offsets (all multiples of 8 so static views are tile-aligned)
ROW_LB2 = 0                              # [FS_V, FS_V]       Laplacian blockdiag, layer 2
ROW_W2T = ROW_LB2 + FS_V                 # K x [LANE_O, FS_V]  layer-2 weights^T (GRID2SH folded)
ROW_B0 = ROW_W2T + K_SPH * LANE_O        # [1, B*N]           b0 per voxel
WIDE_ROWS = ROW_B0 + 8                   # 232

ROW_WIN = 0                              # [LANE_X, KDIM_IN]  stage-1 mixing^T
ROW_LB1 = ROW_WIN + LANE_X               # [LANE_X, LANE_X]   Laplacian blockdiag, layer 1
ROW_W1T = ROW_LB1 + LANE_X               # K x [FS_V, LANE_X] layer-1 weights^T
ROW_B1 = ROW_W1T + K_SPH * FS_V          # [FS_V, 1]          layer-1 bias column
ROW_B2 = ROW_B1 + FS_V                   # [LANE_O, 1]        layer-2 bias column
NARROW_ROWS = ROW_B2 + LANE_O            # 608


# -------------------------------------- fused kernel ------------------------------------
def _fused_kernel(feat_ref, sw_ref, sn_ref, rfe_ref, rfi_ref, out_ref):
    f32 = jnp.float32

    # static views into the two packed weight slabs (single DMA each, sliced in VMEM)
    lb2 = sw_ref[ROW_LB2:ROW_LB2 + FS_V, :FS_V]                       # [128, 128]
    b0 = sw_ref[ROW_B0:ROW_B0 + 1, :B * N_VOX]                        # [1, 128]
    w_in_t = sn_ref[ROW_WIN:ROW_WIN + LANE_X, :KDIM_IN]               # [32, 32]
    lb1 = sn_ref[ROW_LB1:ROW_LB1 + LANE_X, :LANE_X]                   # [32, 32]
    b1c = sn_ref[ROW_B1:ROW_B1 + FS_V, 0:1]                           # [128, 1]
    b2c = sn_ref[ROW_B2:ROW_B2 + LANE_O, 0:1]                         # [32, 1]

    def w1t(k):                                                        # [FS_V, LANE_X]
        return sn_ref[ROW_W1T + k * FS_V:ROW_W1T + (k + 1) * FS_V, :LANE_X]

    def w2t(k):                                                        # [LANE_O, FS_V]
        return sw_ref[ROW_W2T + k * LANE_O:ROW_W2T + (k + 1) * LANE_O, :FS_V]

    # ---- 1) input signal -> input SHC -> sampling grid: ONE matmul ---------------------
    # batch folded into the contraction via zero-padded feat columns / stacked mixing
    # matrices.  x0 rows = (channel, grid-vertex), lanes = (batch, voxel).
    # TODO(synk): general S_in > 1 would need an extra (F, S) channel permute.
    x0 = jnp.dot(w_in_t, feat_ref[...], preferred_element_type=f32)    # [LANE_X, B*N]

    # ---- 2) deconvolution stand-in: 2-layer Chebyshev spherical graph conv -------------
    # TODO(synk): GraphCNNUnet (multi-scale U-Net with pooling/unpooling, block_depth=2)
    # is not reproduced; stand-in keeps the same in/out channel counts.
    def cheb_layer(x_t, l_blk, w_of_k, bias_col):
        acc = jnp.dot(w_of_k(0), x_t, preferred_element_type=f32)
        xm2, xm1 = None, x_t
        for k in range(1, K_SPH):
            xk = jnp.dot(l_blk, xm1, preferred_element_type=f32)
            if k >= 2:
                xk = 2.0 * xk - xm2
            acc = acc + jnp.dot(w_of_k(k), xk, preferred_element_type=f32)
            xm2, xm1 = xm1, xk
        return acc + bias_col                                          # lane-broadcast bias

    h = jnp.maximum(cheb_layer(x0, lb1, w1t, b1c), 0.0)                # [FS_V, B*N]
    dec = cheb_layer(h, lb2, w2t, b2c)                                 # [LANE_O, B*N]

    # ---- 3) split: equi SHC (GRID2SH already folded into W2) / inva max over grid ------
    equi = dec[:N_EQUI * C_SH, :]                                      # [NE*C_SH, B*N]
    inva = jnp.concatenate(
        [jnp.max(dec[N_EQUI * C_SH + o * V_GRID:
                     N_EQUI * C_SH + (o + 1) * V_GRID, :],
                 axis=0, keepdims=True) for o in range(N_INVA)],
        axis=0) * SQRT_4PI                                             # [NI, B*N]

    # ---- 4) fODF normalization (rsqrt + approx reciprocal -> EUP, no VPU divide) -------
    if NORMALIZE:
        t = equi[0:1, :] * rfe_ref[0]
        for o in range(1, N_EQUI):
            t = t + equi[o * C_SH:o * C_SH + 1, :] * rfe_ref[o]
        for o in range(N_INVA):
            t = t + inva[o:o + 1, :] * rfi_ref[o]
        t = t * pl.reciprocal(b0 + EPS, approx=True)
        inv_t = lax.rsqrt(t * t + EPS)                                 # == 1/sqrt(t^2+eps)
        equi = equi * inv_t
        inva = inva * inv_t

    # ---- 5) single merged lane-dense output [NE*C_SH + NI, B*N] = [17, 128] ------------
    out_ref[0:N_EQUI * C_SH, :] = equi
    out_ref[N_EQUI * C_SH:OUT_ROWS, :] = inva


# -------------------------------------- wrapper ------------------------------------------
def _blockdiag(mat, n):
    r, c = mat.shape
    return jnp.einsum('ij,rc->irjc', jnp.eye(n, dtype=mat.dtype), mat).reshape(n * r, n * c)


def _pad(x, rows, cols):
    return jnp.pad(x, ((0, rows - x.shape[0]), (0, cols - x.shape[1])))


def deconvolution_forward(features, signal_to_shc, b0, rf_equi_shc_0, rf_inva_shc_0, params):
    """features [B,F,V_in,X,Y,Z], signal_to_shc [B,V_in,S,C_in], b0 [B,X,Y,Z]."""
    assert S_IN == 1  # TODO(synk): general multi-shell input (S_in > 1) unsupported
    f32 = jnp.float32
    sh2grid = params["SH2GRID"].astype(f32)
    grid2sh = params["GRID2SH"].astype(f32)
    lap = params["L"].astype(f32)
    w1, b1 = params["W1"].astype(f32), params["b1"].astype(f32)
    w2, b2 = params["W2"].astype(f32), params["b2"].astype(f32)

    # ---- activations in column layout, batch folded into the contraction ---------------
    feat_bkn = features.reshape(B, CIN_V_IN, N_VOX).astype(f32)        # rows k = c*V_in+vi
    eye_b = jnp.eye(B, dtype=f32)
    feat_t = jnp.einsum('bkn,bp->pkbn', feat_bkn, eye_b).reshape(
        B * CIN_V_IN, B * N_VOX)                                       # [32, 128] lane-dense

    # per-batch mixing m_b = (signal->SHC)·(SHC->grid), block-diag over channels, stacked
    s2shc = signal_to_shc[:, :, 0, :MIN_C].astype(f32)                 # [B, V_in, MIN_C]
    m_b = jnp.einsum('bvc,cg->bvg', s2shc, sh2grid[:MIN_C])            # [B, V_in, V_grid]
    eye_c = jnp.eye(CIN_UNET, dtype=f32)
    w_in_t = jnp.einsum('bvg,ij->jgbiv', m_b, eye_c).reshape(
        CIN_UNET * V_GRID, B * CIN_V_IN)                               # [32, 32]

    # Laplacian block-diagonals (column layout: L on the left)
    lb1 = _blockdiag(lap, CIN_UNET)                                    # [32, 32]
    lb2 = _blockdiag(lap, FILTER_START)                                # [128, 128]

    # layer-1 weights^T expanded with I_V; K row-slabs of [FS_V, LANE_X]
    eye_v = jnp.eye(V_GRID, dtype=f32)
    w1t = jnp.einsum('kco,vw->kovcw', w1, eye_v).reshape(K_SPH * FS_V, LANE_X)
    b1c = jnp.repeat(b1, V_GRID).reshape(FS_V, 1)                      # [128, 1]

    # layer-2 weights: expand with I_V, fold GRID2SH into the equi columns, transpose
    w2_big = jnp.einsum('kco,wv->kcwov', w2, eye_v).reshape(
        K_SPH * FS_V, OUT_CH * V_GRID)                                 # [384, 48]
    g2s_blk = _blockdiag(grid2sh, N_EQUI)                              # [NE*V, NE*C_SH]
    w2c = jnp.concatenate([w2_big[:, :N_EQUI * V_GRID] @ g2s_blk,
                           w2_big[:, N_EQUI * V_GRID:]], axis=1)       # [384, 32]
    w2t = w2c.reshape(K_SPH, FS_V, LANE_O).transpose(0, 2, 1).reshape(
        K_SPH * LANE_O, FS_V)                                          # [96, 128]
    b2_w = jnp.repeat(b2, V_GRID)[None, :]                             # [1, OUT*V]
    b2c = jnp.concatenate([b2_w[:, :N_EQUI * V_GRID] @ g2s_blk,
                           b2_w[:, N_EQUI * V_GRID:]], axis=1).T       # [32, 1]

    b0_row = b0.reshape(1, B * N_VOX).astype(f32)                      # [1, 128]

    # ---- pack everything into TWO slabs (3 input DMAs total instead of 11) -------------
    slab_wide = jnp.concatenate([
        _pad(lb2, FS_V, WIDE_LANES),
        _pad(w2t, K_SPH * LANE_O, WIDE_LANES),
        _pad(b0_row, 8, WIDE_LANES),
    ], axis=0)                                                          # [232, 128]
    slab_narrow = jnp.concatenate([
        _pad(w_in_t, LANE_X, NARROW_LANES),
        _pad(lb1, LANE_X, NARROW_LANES),
        _pad(w1t, K_SPH * FS_V, NARROW_LANES),
        _pad(b1c, FS_V, NARROW_LANES),
        _pad(b2c, LANE_O, NARROW_LANES),
    ], axis=0)                                                          # [608, 32]

    vmem = pltpu.MemorySpace.VMEM
    smem = pltpu.MemorySpace.SMEM
    out = pl.pallas_call(
        _fused_kernel,
        out_shape=jax.ShapeDtypeStruct((OUT_ROWS, B * N_VOX), jnp.float32),
        in_specs=[pl.BlockSpec(memory_space=vmem),
                  pl.BlockSpec(memory_space=vmem),
                  pl.BlockSpec(memory_space=vmem),
                  pl.BlockSpec(memory_space=smem),
                  pl.BlockSpec(memory_space=smem)],
        out_specs=pl.BlockSpec(memory_space=vmem),
    )(feat_t, slab_wide, slab_narrow,
      rf_equi_shc_0.astype(f32), rf_inva_shc_0.astype(f32))

    # tiny XLA copies back to the PyTorch output layout
    equi_t = out[:N_EQUI * C_SH]
    inva_t = out[N_EQUI * C_SH:]
    x_equi_shc = (equi_t.reshape(N_EQUI, C_SH, B, N_VOX)
                  .transpose(2, 0, 1, 3).reshape(B, N_EQUI, C_SH, X, Y, Z))
    x_inva_shc = (inva_t.reshape(N_INVA, 1, B, N_VOX)
                  .transpose(2, 0, 1, 3).reshape(B, N_INVA, 1, X, Y, Z))
    return x_equi_shc, x_inva_shc


# -------------------------------------- main ---------------------------------------------
if __name__ == "__main__":
    key = jax.random.PRNGKey(0)
    ks = jax.random.split(key, 10)

    # inputs (PyTorch-layout)
    features = jax.random.normal(ks[0], (B, F_IN, V_IN, X, Y, Z), jnp.float32)
    signal_to_shc = 0.2 * jax.random.normal(ks[1], (B, V_IN, S_IN, C_IN), jnp.float32)
    b0 = 1.0 + 0.5 * jax.random.uniform(ks[2], (B, X, Y, Z), jnp.float32)
    rf_equi_shc_0 = jnp.ones((N_EQUI,), jnp.float32)
    rf_inva_shc_0 = jnp.ones((N_INVA,), jnp.float32)

    # deterministic synthetic graphSampling buffers + deconvolution weights
    sh2grid = 0.3 * jax.random.normal(ks[3], (C_SH, V_GRID), jnp.float32)           # SH2S
    grid2sh = 0.05 + 0.25 * jax.random.uniform(ks[4], (V_GRID, C_SH), jnp.float32)  # S2SH
    idx = jnp.arange(V_GRID)
    adj = (jnp.zeros((V_GRID, V_GRID), jnp.float32)
           .at[idx, (idx + 1) % V_GRID].set(1.0)
           .at[idx, (idx - 1) % V_GRID].set(1.0))
    lap = jnp.eye(V_GRID, dtype=jnp.float32) - 0.5 * adj   # symmetric normalized ring Laplacian
    w1 = 0.2 * jax.random.normal(ks[5], (K_SPH, CIN_UNET, FILTER_START), jnp.float32)
    b1 = 0.05 * jax.random.normal(ks[6], (FILTER_START,), jnp.float32)
    w2 = 0.2 * jax.random.normal(ks[7], (K_SPH, FILTER_START, OUT_CH), jnp.float32)
    b2 = 0.5 + 0.05 * jax.random.normal(ks[8], (OUT_CH,), jnp.float32)
    params = dict(SH2GRID=sh2grid, GRID2SH=grid2sh, L=lap, W1=w1, b1=b1, W2=w2, b2=b2)

    fwd = jax.jit(deconvolution_forward)
    equi, inva = fwd(features, signal_to_shc, b0, rf_equi_shc_0, rf_inva_shc_0, params)
    jax.block_until_ready((equi, inva))

    # ---------------------------- pure-JAX reference check -------------------------------
    def reference(feat, s2shc, b0, rf_e, rf_i):
        r = jnp.einsum('bfvxyz,bvsc->bfscxyz', feat, s2shc)
        r = jnp.einsum('bfscxyz,cv->bfsvxyz', r[:, :, :, :MIN_C], sh2grid[:MIN_C])
        x = r.reshape(B, CIN_UNET, V_GRID, N_VOX)

        def cheb(x, w, bias):
            xs = [x]
            if K_SPH > 1:
                xs.append(jnp.einsum('vw,bcwn->bcvn', lap, x))
                for _ in range(2, K_SPH):
                    xs.append(2.0 * jnp.einsum('vw,bcwn->bcvn', lap, xs[-1]) - xs[-2])
            xs = jnp.stack(xs, 0)
            return jnp.einsum('kbcvn,kco->bovn', xs, w) + bias[None, :, None, None]

        h = jax.nn.relu(cheb(x, w1, b1))
        dec = cheb(h, w2, b2).reshape(B, OUT_CH, V_GRID, X, Y, Z)
        equi = dec[:, :N_EQUI]
        inva = jnp.max(dec[:, N_EQUI:], axis=2)
        equi_shc = jnp.einsum('bovxyz,vc->bocxyz', equi, grid2sh)
        inva_shc = (inva * SQRT_4PI)[:, :, None]
        to_norm = jnp.sum(equi_shc[:, :, 0:1] * rf_e[None, :, None, None, None, None],
                          axis=1, keepdims=True)
        to_norm = to_norm + jnp.sum(inva_shc * rf_i[None, :, None, None, None, None],
                                    axis=1, keepdims=True)
        to_norm = to_norm / (b0[:, None, None] + EPS)
        to_norm = jnp.sqrt(to_norm ** 2 + EPS)
        return equi_shc / to_norm, inva_shc / to_norm

    ref_equi, ref_inva = reference(features, signal_to_shc, b0, rf_equi_shc_0, rf_inva_shc_0)
    # all-f32 pipeline; tolerance loosened only for the approximate EUP reciprocal used
    # in the normalization path (error << 1e-3 on well-conditioned b0).
    np.testing.assert_allclose(np.asarray(equi), np.asarray(ref_equi), rtol=1e-2, atol=1e-2)
    np.testing.assert_allclose(np.asarray(inva), np.asarray(ref_inva), rtol=1e-2, atol=1e-2)
    print("KERNEL_OK")
</pallas_src>

<mosaic_0001>
module attributes {stable_mosaic.version = 11 : i64} {
  func.func @_fused_kernel(%arg0: memref<32x128xf32, #tpu.memory_space<vmem>>, %arg1: memref<232x128xf32, #tpu.memory_space<vmem>>, %arg2: memref<608x32xf32, #tpu.memory_space<vmem>>, %arg3: memref<2xf32, #tpu.memory_space<smem>>, %arg4: memref<1xf32, #tpu.memory_space<smem>>, %arg5: memref<17x128xf32, #tpu.memory_space<vmem>>) attributes {dimension_semantics = [], scalar_prefetch = 0 : i64, scratch_operands = 0 : i64, tpu.core_type = #tpu.core_type<tc>} {
    %c0 = arith.constant 0 : index
    %c0_0 = arith.constant 0 : index
    %0 = vector.load %arg1[%c0, %c0_0] : memref<232x128xf32, #tpu.memory_space<vmem>>, vector<128x128xf32>
    %c224 = arith.constant 224 : index
    %c0_1 = arith.constant 0 : index
    %1 = vector.load %arg1[%c224, %c0_1] : memref<232x128xf32, #tpu.memory_space<vmem>>, vector<1x128xf32>
    %c0_2 = arith.constant 0 : index
    %c0_3 = arith.constant 0 : index
    %2 = vector.load %arg2[%c0_2, %c0_3] : memref<608x32xf32, #tpu.memory_space<vmem>>, vector<32x32xf32>
    %c32 = arith.constant 32 : index
    %c0_4 = arith.constant 0 : index
    %3 = vector.load %arg2[%c32, %c0_4] : memref<608x32xf32, #tpu.memory_space<vmem>>, vector<32x32xf32>
    %c448 = arith.constant 448 : index
    %c0_5 = arith.constant 0 : index
    %4 = vector.load %arg2[%c448, %c0_5] : memref<608x32xf32, #tpu.memory_space<vmem>>, vector<128x1xf32>
    %c576 = arith.constant 576 : index
    %c0_6 = arith.constant 0 : index
    %5 = vector.load %arg2[%c576, %c0_6] : memref<608x32xf32, #tpu.memory_space<vmem>>, vector<32x1xf32>
    %c0_7 = arith.constant 0 : index
    %c0_8 = arith.constant 0 : index
    %6 = vector.load %arg0[%c0_7, %c0_8] : memref<32x128xf32, #tpu.memory_space<vmem>>, vector<32x128xf32>
    %cst = arith.constant dense<0.000000e+00> : vector<32x128xf32>
    %7 = tpu.matmul %2, %6, %cst {dimension_numbers = #tpu.dot_dimension_numbers<[1], [0], [0], [1], [0, 0, 1, 1], [], []>} : vector<32x32xf32>, vector<32x128xf32>, vector<32x128xf32> -> vector<32x128xf32>
    %c64 = arith.constant 64 : index
    %c0_9 = arith.constant 0 : index
    %8 = vector.load %arg2[%c64, %c0_9] : memref<608x32xf32, #tpu.memory_space<vmem>>, vector<128x32xf32>
    %cst_10 = arith.constant dense<0.000000e+00> : vector<128x128xf32>
    %9 = tpu.matmul %8, %7, %cst_10 {dimension_numbers = #tpu.dot_dimension_numbers<[1], [0], [0], [1], [0, 0, 1, 1], [], []>} : vector<128x32xf32>, vector<32x128xf32>, vector<128x128xf32> -> vector<128x128xf32>
    %cst_11 = arith.constant dense<0.000000e+00> : vector<32x128xf32>
    %10 = tpu.matmul %3, %7, %cst_11 {dimension_numbers = #tpu.dot_dimension_numbers<[1], [0], [0], [1], [0, 0, 1, 1], [], []>} : vector<32x32xf32>, vector<32x128xf32>, vector<32x128xf32> -> vector<32x128xf32>
    %c192 = arith.constant 192 : index
    %c0_12 = arith.constant 0 : index
    %11 = vector.load %arg2[%c192, %c0_12] : memref<608x32xf32, #tpu.memory_space<vmem>>, vector<128x32xf32>
    %cst_13 = arith.constant dense<0.000000e+00> : vector<128x128xf32>
    %12 = tpu.matmul %11, %10, %cst_13 {dimension_numbers = #tpu.dot_dimension_numbers<[1], [0], [0], [1], [0, 0, 1, 1], [], []>} : vector<128x32xf32>, vector<32x128xf32>, vector<128x128xf32> -> vector<128x128xf32>
    %13 = arith.addf %9, %12 : vector<128x128xf32>
    %cst_14 = arith.constant dense<0.000000e+00> : vector<32x128xf32>
    %14 = tpu.matmul %3, %10, %cst_14 {dimension_numbers = #tpu.dot_dimension_numbers<[1], [0], [0], [1], [0, 0, 1, 1], [], []>} : vector<32x32xf32>, vector<32x128xf32>, vector<32x128xf32> -> vector<32x128xf32>
    %cst_15 = arith.constant 2.000000e+00 : f32
    %15 = vector.broadcast %cst_15 : f32 to vector<32x128xf32>
    %16 = arith.mulf %15, %14 : vector<32x128xf32>
    %17 = arith.subf %16, %7 : vector<32x128xf32>
    %c320 = arith.constant 320 : index
    %c0_16 = arith.constant 0 : index
    %18 = vector.load %arg2[%c320, %c0_16] : memref<608x32xf32, #tpu.memory_space<vmem>>, vector<128x32xf32>
    %cst_17 = arith.constant dense<0.000000e+00> : vector<128x128xf32>
    %19 = tpu.matmul %18, %17, %cst_17 {dimension_numbers = #tpu.dot_dimension_numbers<[1], [0], [0], [1], [0, 0, 1, 1], [], []>} : vector<128x32xf32>, vector<32x128xf32>, vector<128x128xf32> -> vector<128x128xf32>
    %20 = arith.addf %13, %19 : vector<128x128xf32>
    %21 = vector.broadcast %4 : vector<128x1xf32> to vector<128x128xf32>
    %22 = arith.addf %20, %21 : vector<128x128xf32>
    %cst_18 = arith.constant 0.000000e+00 : f32
    %23 = vector.broadcast %cst_18 : f32 to vector<128x128xf32>
    %24 = arith.maximumf %22, %23 : vector<128x128xf32>
    %c128 = arith.constant 128 : index
    %c0_19 = arith.constant 0 : index
    %25 = vector.load %arg1[%c128, %c0_19] : memref<232x128xf32, #tpu.memory_space<vmem>>, vector<32x128xf32>
    %cst_20 = arith.constant dense<0.000000e+00> : vector<32x128xf32>
    %26 = tpu.matmul %25, %24, %cst_20 {dimension_numbers = #tpu.dot_dimension_numbers<[1], [0], [0], [1], [0, 0, 1, 1], [], []>} : vector<32x128xf32>, vector<128x128xf32>, vector<32x128xf32> -> vector<32x128xf32>
    %cst_21 = arith.constant dense<0.000000e+00> : vector<128x128xf32>
    %27 = tpu.matmul %0, %24, %cst_21 {dimension_numbers = #tpu.dot_dimension_numbers<[1], [0], [0], [1], [0, 0, 1, 1], [], []>} : vector<128x128xf32>, vector<128x128xf32>, vector<128x128xf32> -> vector<128x128xf32>
    %c160 = arith.constant 160 : index
    %c0_22 = arith.constant 0 : index
    %28 = vector.load %arg1[%c160, %c0_22] : memref<232x128xf32, #tpu.memory_space<vmem>>, vector<32x128xf32>
    %cst_23 = arith.constant dense<0.000000e+00> : vector<32x128xf32>
    %29 = tpu.matmul %28, %27, %cst_23 {dimension_numbers = #tpu.dot_dimension_numbers<[1], [0], [0], [1], [0, 0, 1, 1], [], []>} : vector<32x128xf32>, vector<128x128xf32>, vector<32x128xf32> -> vector<32x128xf32>
    %30 = arith.addf %26, %29 : vector<32x128xf32>
    %cst_24 = arith.constant dense<0.000000e+00> : vector<128x128xf32>
    %31 = tpu.matmul %0, %27, %cst_24 {dimension_numbers = #tpu.dot_dimension_numbers<[1], [0], [0], [1], [0, 0, 1, 1], [], []>} : vector<128x128xf32>, vector<128x128xf32>, vector<128x128xf32> -> vector<128x128xf32>
    %cst_25 = arith.constant 2.000000e+00 : f32
    %32 = vector.broadcast %cst_25 : f32 to vector<128x128xf32>
    %33 = arith.mulf %32, %31 : vector<128x128xf32>
    %34 = arith.subf %33, %24 : vector<128x128xf32>
    %c192_26 = arith.constant 192 : index
    %c0_27 = arith.constant 0 : index
    %35 = vector.load %arg1[%c192_26, %c0_27] : memref<232x128xf32, #tpu.memory_space<vmem>>, vector<32x128xf32>
    %cst_28 = arith.constant dense<0.000000e+00> : vector<32x128xf32>
    %36 = tpu.matmul %35, %34, %cst_28 {dimension_numbers = #tpu.dot_dimension_numbers<[1], [0], [0], [1], [0, 0, 1, 1], [], []>} : vector<32x128xf32>, vector<128x128xf32>, vector<32x128xf32> -> vector<32x128xf32>
    %37 = arith.addf %30, %36 : vector<32x128xf32>
    %38 = vector.broadcast %5 : vector<32x1xf32> to vector<32x128xf32>
    %39 = arith.addf %37, %38 : vector<32x128xf32>
    %40 = vector.extract_strided_slice %39 {offsets = [0, 0], sizes = [16, 128], strides = [1, 1]} : vector<32x128xf32> to vector<16x128xf32>
    %41 = vector.extract_strided_slice %39 {offsets = [16, 0], sizes = [16, 128], strides = [1, 1]} : vector<32x128xf32> to vector<16x128xf32>
    %cst_29 = arith.constant dense<0xFF800000> : vector<128xf32>
    %42 = vector.multi_reduction <maximumf>, %41, %cst_29 [0] : vector<16x128xf32> to vector<128xf32>
    %43 = vector.shape_cast %42 : vector<128xf32> to vector<1x128xf32>
    %cst_30 = arith.constant 3.54490781 : f32
    %44 = vector.broadcast %cst_30 : f32 to vector<1x128xf32>
    %45 = arith.mulf %43, %44 : vector<1x128xf32>
    %46 = vector.extract_strided_slice %40 {offsets = [0, 0], sizes = [1, 128], strides = [1, 1]} : vector<16x128xf32> to vector<1x128xf32>
    %c0_31 = arith.constant 0 : index
    %47 = memref.load %arg3[%c0_31] : memref<2xf32, #tpu.memory_space<smem>>
    %48 = vector.broadcast %47 : f32 to vector<1x128xf32>
    %49 = arith.mulf %46, %48 : vector<1x128xf32>
    %50 = vector.extract_strided_slice %40 {offsets = [8, 0], sizes = [1, 128], strides = [1, 1]} : vector<16x128xf32> to vector<1x128xf32>
    %c1 = arith.constant 1 : index
    %51 = memref.load %arg3[%c1] : memref<2xf32, #tpu.memory_space<smem>>
    %52 = vector.broadcast %51 : f32 to vector<1x128xf32>
    %53 = arith.mulf %50, %52 : vector<1x128xf32>
    %54 = arith.addf %49, %53 : vector<1x128xf32>
    %c0_32 = arith.constant 0 : index
    %55 = memref.load %arg4[%c0_32] : memref<1xf32, #tpu.memory_space<smem>>
    %56 = vector.broadcast %55 : f32 to vector<1x128xf32>
    %57 = arith.mulf %45, %56 : vector<1x128xf32>
    %58 = arith.addf %54, %57 : vector<1x128xf32>
    %cst_33 = arith.constant 1.000000e-16 : f32
    %59 = vector.broadcast %cst_33 : f32 to vector<1x128xf32>
    %60 = arith.addf %1, %59 : vector<1x128xf32>
    %61 = tpu.reciprocal %60 {approx = true} : vector<1x128xf32> -> vector<1x128xf32>
    %62 = arith.mulf %58, %61 : vector<1x128xf32>
    %63 = arith.mulf %62, %62 : vector<1x128xf32>
    %cst_34 = arith.constant 1.000000e-16 : f32
    %64 = vector.broadcast %cst_34 : f32 to vector<1x128xf32>
    %65 = arith.addf %63, %64 : vector<1x128xf32>
    %66 = math.rsqrt %65 : vector<1x128xf32>
    %67 = vector.broadcast %66 : vector<1x128xf32> to vector<16x128xf32>
    %68 = arith.mulf %40, %67 : vector<16x128xf32>
    %69 = arith.mulf %45, %66 : vector<1x128xf32>
    %c0_35 = arith.constant 0 : index
    %c0_36 = arith.constant 0 : index
    %70 = vector.load %arg5[%c0_35, %c0_36] : memref<17x128xf32, #tpu.memory_space<vmem>>, vector<16x128xf32>
    tpu.vector_store %arg5[%c0_35, %c0_36], %68 {strides = array<i32>} : memref<17x128xf32, #tpu.memory_space<vmem>>, vector<16x128xf32>,
    %c16 = arith.constant 16 : index
    %c0_37 = arith.constant 0 : index
    %71 = vector.load %arg5[%c16, %c0_37] : memref<17x128xf32, #tpu.memory_space<vmem>>, vector<1x128xf32>
    tpu.vector_store %arg5[%c16, %c0_37], %69 {strides = array<i32>} : memref<17x128xf32, #tpu.memory_space<vmem>>, vector<1x128xf32>,
    return
  }
}

</mosaic_0001>

<llo_original>
// kernel: deconvolution_forward.1
$region0: #{deconvolution_forward.1}
  #allocation0 [shape = 'u32[]', space=smem, size = 0x4, offset = 0x4, fixed_abs, tag = 'smem constant byte address 0x4 - core index']
  #allocation1 [shape = 'u32[144,128]{1,0:T(1,128)}', space=vmem, size = 0x12000, scoped, tag = 'internal scratch']
  #allocation2 [shape = 'f32[1]{0:T(128)S(6)}', space=smem, size = 0x200, scoped, tag = 'scoped memory for deconvolution_forward.1']
  %s0 = inlined_call_operand.vmem [shape: f32[32,128], index: 0, kind: input, shape index: {}]
  %s1 = inlined_call_operand.vmem [shape: f32[232,128], index: 1, kind: input, shape index: {}]
  %s2 = inlined_call_operand.vmem [shape: f32[608,32], index: 2, kind: input, shape index: {}]
  %s3 = inlined_call_operand.vmem [shape: f32[2], index: 3, kind: input, shape index: {}]
  %s4 = inlined_call_operand.<no memory space> [shape: f32[1], index: 4, kind: input, shape index: {}]
  %s5 = inlined_call_operand.vmem [shape: f32[17,128], index: 5, kind: output, shape index: {}]
  %s6 = sld [smem:[#allocation0]]
  $region34: #{deconvolution_forward.1} parent=0
    _
  %s8 = ssub.s32 1, %s6
  %s9 = scalar_select 0, %s8, %s6
  %10 = sst [smem:[#allocation2]] %s4
  $region1: #{deconvolution_forward.1} parent=0
    #allocation3 [shape = 'u8[512]{0}', space=smem, size = 0x200, scoped, tag = 'input window, operand 3, single buffered']
    #allocation4 [shape = 's32[1]{0}', space=sflag, size = 0x4, scoped, tag = 'scoped memory for deconvolution_forward.1']
    %11 = vsyncpa [#allocation4], 0
    // Predicated region
    $region2: #{deconvolution_forward.1} parent=1 // pred_check
      _
    $region3: #{deconvolution_forward.1} parent=1 // pred_check_branch
      %13 = sbr.rel (0) target = $region5
    $region4: #{deconvolution_forward.1} parent=1 // pred_region
      _
    $region5: #{deconvolution_forward.1} parent=1 // pred_fallthru
      _
    // Predicated region
    $region6: #{deconvolution_forward.1} parent=1 // pred_check
      _
    $region7: #{deconvolution_forward.1} parent=1 // pred_check_branch
      %15 = sbr.rel (0) target = $region9
    $region8: #{deconvolution_forward.1} parent=1 // pred_region
      _
    $region9: #{deconvolution_forward.1} parent=1 // pred_fallthru
      _
    // Predicated region
    $region10: #{deconvolution_forward.1} parent=1 // pred_check
      _
    $region11: #{deconvolution_forward.1} parent=1 // pred_check_branch
      %17 = sbr.rel (0) target = $region13
    $region12: #{deconvolution_forward.1} parent=1 // pred_region
      _
    $region13: #{deconvolution_forward.1} parent=1 // pred_fallthru
      _
    // Predicated region
    $region14: #{deconvolution_forward.1} parent=1 // pred_check
      _
    $region15: #{deconvolution_forward.1} parent=1 // pred_check_branch
      %19 = sbr.rel (0) target = $region17
    $region16: #{deconvolution_forward.1} parent=1 // pred_region
      %s21 = ssub.s32 16, 16
      %22 = vsyncadd [#allocation4], %s21
      %s24 = sshll.u32 %s3, 4
      %s25 = int_to_ptr.vmem [resolvable:$true] %s24
      %27 = dma.vmem_to_smem %s25, 16, [#allocation3], [#allocation4]
    $region17: #{deconvolution_forward.1} parent=1 // pred_fallthru
      _
    // Predicated region
    $region18: #{deconvolution_forward.1} parent=1 // pred_check
      _
    $region19: #{deconvolution_forward.1} parent=1 // pred_check_branch
      %29 = sbr.rel (0) target = $region21
    $region20: #{deconvolution_forward.1} parent=1 // pred_region
      _
    $region21: #{deconvolution_forward.1} parent=1 // pred_fallthru
      _
    // Predicated region
    $region22: #{deconvolution_forward.1} parent=1 // pred_check
      _
    $region23: #{deconvolution_forward.1} parent=1 // pred_check_branch
      %31 = sbr.rel (0) target = $region25
    $region24: #{deconvolution_forward.1} parent=1 // pred_region
      %32 = dma.done [#allocation4], 16
    $region25: #{deconvolution_forward.1} parent=1 // pred_fallthru
      _
    %33 = sfence
    %v34 = vld [vmem:[%s1] sm:$0xff]
    %v35 = vld [vmem:[%s1 + $0x8] sm:$0xff]
    %v36 = vld [vmem:[%s1 + $0x10] sm:$0xff]
    %v37 = vld [vmem:[%s1 + $0x18] sm:$0xff]
    %v38 = vld [vmem:[%s1 + $0x20] sm:$0xff]
    %v39 = vld [vmem:[%s1 + $0x28] sm:$0xff]
    %v40 = vld [vmem:[%s1 + $0x30] sm:$0xff]
    %v41 = vld [vmem:[%s1 + $0x38] sm:$0xff]
    %v42 = vld [vmem:[%s1 + $0x40] sm:$0xff]
    %v43 = vld [vmem:[%s1 + $0x48] sm:$0xff]
    %v44 = vld [vmem:[%s1 + $0x50] sm:$0xff]
    %v45 = vld [vmem:[%s1 + $0x58] sm:$0xff]
    %v46 = vld [vmem:[%s1 + $0x60] sm:$0xff]
    %v47 = vld [vmem:[%s1 + $0x68] sm:$0xff]
    %v48 = vld [vmem:[%s1 + $0x70] sm:$0xff]
    %v49 = vld [vmem:[%s1 + $0x78] sm:$0xff]
    %v50 = vld [vmem:[%s1 + $0xe0] sm:$0x1]
    %v51 = vld [vmem:[%s2] sm:$0xff]
    %v52 = vld [vmem:[%s2 + $0x8] sm:$0xff]
    %v53 = vld [vmem:[%s2 + $0x10] sm:$0xff]
    %v54 = vld [vmem:[%s2 + $0x18] sm:$0xff]
    %v55 = vld [vmem:[%s2 + $0x20] sm:$0xff]
    %v56 = vld [vmem:[%s2 + $0x28] sm:$0xff]
    %v57 = vld [vmem:[%s2 + $0x30] sm:$0xff]
    %v58 = vld [vmem:[%s2 + $0x38] sm:$0xff]
    %v59 = vld [vmem:[%s2 + $0x1c0] sm:$0xff]
    %v60 = vld [vmem:[%s2 + $0x1c8] sm:$0xff]
    %v61 = vld [vmem:[%s2 + $0x1d0] sm:$0xff]
    %v62 = vld [vmem:[%s2 + $0x1d8] sm:$0xff]
    %v63 = vld [vmem:[%s2 + $0x1e0] sm:$0xff]
    %v64 = vld [vmem:[%s2 + $0x1e8] sm:$0xff]
    %v65 = vld [vmem:[%s2 + $0x1f0] sm:$0xff]
    %v66 = vld [vmem:[%s2 + $0x1f8] sm:$0xff]
    %v67 = vld [vmem:[%s2 + $0x200] sm:$0xff]
    %v68 = vld [vmem:[%s2 + $0x208] sm:$0xff]
    %v69 = vld [vmem:[%s2 + $0x210] sm:$0xff]
    %v70 = vld [vmem:[%s2 + $0x218] sm:$0xff]
    %v71 = vld [vmem:[%s2 + $0x220] sm:$0xff]
    %v72 = vld [vmem:[%s2 + $0x228] sm:$0xff]
    %v73 = vld [vmem:[%s2 + $0x230] sm:$0xff]
    %v74 = vld [vmem:[%s2 + $0x238] sm:$0xff]
    %v75 = vld [vmem:[%s2 + $0x240] sm:$0xff]
    %v76 = vld [vmem:[%s2 + $0x248] sm:$0xff]
    %v77 = vld [vmem:[%s2 + $0x250] sm:$0xff]
    %v78 = vld [vmem:[%s2 + $0x258] sm:$0xff]
    %v79 = vld [vmem:[%s0] sm:$0xff]
    %v80 = vld [vmem:[%s0 + $0x8] sm:$0xff]
    %v81 = vld [vmem:[%s0 + $0x10] sm:$0xff]
    %v82 = vld [vmem:[%s0 + $0x18] sm:$0xff]
    %vm83 = vcmask 261120
    %v85 = vsel %vm83, %v51, 0
    %v88 = vsel %vm83, %v52, 0
    %v91 = vsel %vm83, %v53, 0
    %v94 = vsel %vm83, %v54, 0
    %96 = vmatprep.subr.mxu0 0.0
    %97 = vmatpush1.msra.mxu0 %v79
    %98 = vmatprep.subr.mxu0 0.0
    %99 = vmatpush1.msra.mxu0 %v80
    %100 = vmatprep.subr.mxu0 0.0
    %101 = vmatpush1.msra.mxu0 %v81
    %102 = vmatprep.subr.mxu0 0.0
    %103 = vmatpush1.msra.mxu0 %v82
    %104 = vmatprep.subr.mxu0 0.0
    %105 = vmatpush1.msra.mxu0 0.0
    %106 = vmatprep.subr.mxu0 0.0
    %107 = vmatpush1.msra.mxu0 0.0
    %108 = vmatprep.subr.mxu0 0.0
    %109 = vmatpush1.msra.mxu0 0.0
    %110 = vmatprep.subr.mxu0 0.0
    %111 = vmatpush1.msra.mxu0 0.0
    %112 = vmatprep.subr.mxu0 0.0
    %113 = vmatpush1.msra.mxu0 0.0
    %114 = vmatprep.subr.mxu0 0.0
    %115 = vmatpush1.msra.mxu0 0.0
    %116 = vmatprep.subr.mxu0 0.0
    %117 = vmatpush1.msra.mxu0 0.0
    %118 = vmatprep.subr.mxu0 0.0
    %119 = vmatpush1.msra.mxu0 0.0
    %120 = vmatprep.subr.mxu0 0.0
    %121 = vmatpush1.msra.mxu0 0.0
    %122 = vmatprep.subr.mxu0 0.0
    %123 = vmatpush1.msra.mxu0 0.0
    %124 = vmatprep.subr.mxu0 0.0
    %125 = vmatpush1.msra.mxu0 0.0
    %126 = vmatprep.subr.mxu0 0.0
    %127 = vmatpush1.msra.mxu0 0.0
    %128 = vmatprep.subr.mxu0 0.0
    %129 = vmatpush1.msra.mxu0 0.0
    %130 = vmatprep.subr.mxu0 0.0
    %131 = vmatpush1.msra.mxu0 0.0
    %132 = vmatprep.subr.mxu0 0.0
    %133 = vmatpush1.msra.mxu0 0.0
    %134 = vmatprep.subr.mxu0 0.0
    %135 = vmatpush1.msra.mxu0 0.0
    %136 = vmatprep.subr.mxu0 0.0
    %137 = vmatpush1.msra.mxu0 0.0
    %138 = vmatprep.subr.mxu0 0.0
    %139 = vmatpush1.msra.mxu0 0.0
    %140 = vmatprep.subr.mxu0 0.0
    %141 = vmatpush1.msra.mxu0 0.0
    %142 = vmatprep.subr.mxu0 0.0
    %143 = vmatpush1.msra.mxu0 0.0
    %144 = vmatprep.subr.mxu0 0.0
    %145 = vmatpush1.msra.mxu0 0.0
    %146 = vmatprep.subr.mxu0 0.0
    %147 = vmatpush1.msra.mxu0 0.0
    %148 = vmatprep.subr.mxu0 0.0
    %149 = vmatpush1.msra.mxu0 0.0
    %150 = vmatprep.subr.mxu0 0.0
    %151 = vmatpush1.msra.mxu0 0.0
    %152 = vmatprep.subr.mxu0 0.0
    %153 = vmatpush1.msra.mxu0 0.0
    %154 = vmatprep.subr.mxu0 0.0
    %155 = vmatpush1.msra.mxu0 0.0
    %156 = vmatprep.subr.mxu0 0.0
    %157 = vmatpush1.msra.mxu0 0.0
    %158 = vmatprep.subr.mxu0 0.0
    %159 = vmatpush1.msra.mxu0 0.0
    %160 = vmatprep.mubr.f32.mxu0 0.0
    %161 = vmatmul.mubr.f32.gmra.mrb[0].mxu0 %v85
    %v162 = vpop.f32.mrb[0].mxu0
    %v163 = vadd.f32 0.0, %v162
    %v164 = vpop.f32.mrb[0].mxu0
    %165 = vmatprep.mubr.f32.mxu0 0.0
    %166 = vmatmul.mubr.f32.gmra.mrb[0].mxu0 %v88
    %v167 = vpop.f32.mrb[0].mxu0
    %v168 = vadd.f32 0.0, %v167
    %v169 = vpop.f32.mrb[0].mxu0
    %170 = vmatprep.mubr.f32.mxu0 0.0
    %171 = vmatmul.mubr.f32.gmra.mrb[0].mxu0 %v91
    %v172 = vpop.f32.mrb[0].mxu0
    %v173 = vadd.f32 0.0, %v172
    %v174 = vpop.f32.mrb[0].mxu0
    %175 = vmatprep.mubr.f32.mxu0 0.0
    %176 = vmatmul.mubr.f32.gmra.mrb[0].mxu0 %v94
    %v177 = vpop.f32.mrb[0].mxu0
    %v178 = vadd.f32 0.0, %v177
    %v179 = vpop.f32.mrb[0].mxu0
    %180 = vdwg.mxu0
    %v181 = vld [vmem:[%s2 + $0x40] sm:$0xff]
    %v182 = vld [vmem:[%s2 + $0x48] sm:$0xff]
    %v183 = vld [vmem:[%s2 + $0x50] sm:$0xff]
    %v184 = vld [vmem:[%s2 + $0x58] sm:$0xff]
    %v185 = vld [vmem:[%s2 + $0x60] sm:$0xff]
    %v186 = vld [vmem:[%s2 + $0x68] sm:$0xff]
    %v187 = vld [vmem:[%s2 + $0x70] sm:$0xff]
    %v188 = vld [vmem:[%s2 + $0x78] sm:$0xff]
    %v189 = vld [vmem:[%s2 + $0x80] sm:$0xff]
    %v190 = vld [vmem:[%s2 + $0x88] sm:$0xff]
    %v191 = vld [vmem:[%s2 + $0x90] sm:$0xff]
    %v192 = vld [vmem:[%s2 + $0x98] sm:$0xff]
    %v193 = vld [vmem:[%s2 + $0xa0] sm:$0xff]
    %v194 = vld [vmem:[%s2 + $0xa8] sm:$0xff]
    %v195 = vld [vmem:[%s2 + $0xb0] sm:$0xff]
    %v196 = vld [vmem:[%s2 + $0xb8] sm:$0xff]
    %v198 = vsel %vm83, %v55, 0
    %v201 = vsel %vm83, %v56, 0
    %v204 = vsel %vm83, %v57, 0
    %v207 = vsel %vm83, %v58, 0
    %209 = vmatprep.subr.mxu0 0.0
    %210 = vmatpush1.msra.mxu0 %v163
    %211 = vmatprep.subr.mxu0 0.0
    %212 = vmatpush1.msra.mxu0 %v168
    %213 = vmatprep.subr.mxu0 0.0
    %214 = vmatpush1.msra.mxu0 %v173
    %215 = vmatprep.subr.mxu0 0.0
    %216 = vmatpush1.msra.mxu0 %v178
    %217 = vmatprep.subr.mxu0 0.0
    %218 = vmatpush1.msra.mxu0 0.0
    %219 = vmatprep.subr.mxu0 0.0
    %220 = vmatpush1.msra.mxu0 0.0
    %221 = vmatprep.subr.mxu0 0.0
    %222 = vmatpush1.msra.mxu0 0.0
    %223 = vmatprep.subr.mxu0 0.0
    %224 = vmatpush1.msra.mxu0 0.0
    %225 = vmatprep.subr.mxu0 0.0
    %226 = vmatpush1.msra.mxu0 0.0
    %227 = vmatprep.subr.mxu0 0.0
    %228 = vmatpush1.msra.mxu0 0.0
    %229 = vmatprep.subr.mxu0 0.0
    %230 = vmatpush1.msra.mxu0 0.0
    %231 = vmatprep.subr.mxu0 0.0
    %232 = vmatpush1.msra.mxu0 0.0
    %233 = vmatprep.subr.mxu0 0.0
    %234 = vmatpush1.msra.mxu0 0.0
    %235 = vmatprep.subr.mxu0 0.0
    %236 = vmatpush1.msra.mxu0 0.0
    %237 = vmatprep.subr.mxu0 0.0
    %238 = vmatpush1.msra.mxu0 0.0
    %239 = vmatprep.subr.mxu0 0.0
    %240 = vmatpush1.msra.mxu0 0.0
    %241 = vmatprep.subr.mxu0 0.0
    %242 = vmatpush1.msra.mxu0 0.0
    %243 = vmatprep.subr.mxu0 0.0
    %244 = vmatpush1.msra.mxu0 0.0
    %245 = vmatprep.subr.mxu0 0.0
    %246 = vmatpush1.msra.mxu0 0.0
    %247 = vmatprep.subr.mxu0 0.0
    %248 = vmatpush1.msra.mxu0 0.0
    %249 = vmatprep.subr.mxu0 0.0
    %250 = vmatpush1.msra.mxu0 0.0
    %251 = vmatprep.subr.mxu0 0.0
    %252 = vmatpush1.msra.mxu0 0.0
    %253 = vmatprep.subr.mxu0 0.0
    %254 = vmatpush1.msra.mxu0 0.0
    %255 = vmatprep.subr.mxu0 0.0
    %256 = vmatpush1.msra.mxu0 0.0
    %257 = vmatprep.subr.mxu0 0.0
    %258 = vmatpush1.msra.mxu0 0.0
    %259 = vmatprep.subr.mxu0 0.0
    %260 = vmatpush1.msra.mxu0 0.0
    %261 = vmatprep.subr.mxu0 0.0
    %262 = vmatpush1.msra.mxu0 0.0
    %263 = vmatprep.subr.mxu0 0.0
    %264 = vmatpush1.msra.mxu0 0.0
    %265 = vmatprep.subr.mxu0 0.0
    %266 = vmatpush1.msra.mxu0 0.0
    %267 = vmatprep.subr.mxu0 0.0
    %268 = vmatpush1.msra.mxu0 0.0
    %269 = vmatprep.subr.mxu0 0.0
    %270 = vmatpush1.msra.mxu0 0.0
    %271 = vmatprep.subr.mxu0 0.0
    %272 = vmatpush1.msra.mxu0 0.0
    %273 = vmatprep.mubr.f32.mxu0 0.0
    %274 = vmatmul.mubr.f32.gmra.mrb[0].mxu0 %v198
    %v275 = vpop.f32.mrb[0].mxu0
    %v276 = vadd.f32 0.0, %v275
    %v277 = vpop.f32.mrb[0].mxu0
    %278 = vmatprep.mubr.f32.mxu0 0.0
    %279 = vmatmul.mubr.f32.gmra.mrb[0].mxu0 %v201
    %v280 = vpop.f32.mrb[0].mxu0
    %v281 = vadd.f32 0.0, %v280
    %v282 = vpop.f32.mrb[0].mxu0
    %283 = vmatprep.mubr.f32.mxu0 0.0
    %284 = vmatmul.mubr.f32.gmra.mrb[0].mxu0 %v204
    %v285 = vpop.f32.mrb[0].mxu0
    %v286 = vadd.f32 0.0, %v285
    %v287 = vpop.f32.mrb[0].mxu0
    %288 = vmatprep.mubr.f32.mxu0 0.0
    %289 = vmatmul.mubr.f32.gmra.mrb[0].mxu0 %v207
    %v290 = vpop.f32.mrb[0].mxu0
    %v291 = vadd.f32 0.0, %v290
    %v292 = vpop.f32.mrb[0].mxu0
    %293 = vdwg.mxu0
    %v294 = vld [vmem:[%s2 + $0xc0] sm:$0xff]
    %v295 = vld [vmem:[%s2 + $0xc8] sm:$0xff]
    %v296 = vld [vmem:[%s2 + $0xd0] sm:$0xff]
    %v297 = vld [vmem:[%s2 + $0xd8] sm:$0xff]
    %v298 = vld [vmem:[%s2 + $0xe0] sm:$0xff]
    %v299 = vld [vmem:[%s2 + $0xe8] sm:$0xff]
    %v300 = vld [vmem:[%s2 + $0xf0] sm:$0xff]
    %v301 = vld [vmem:[%s2 + $0xf8] sm:$0xff]
    %v302 = vld [vmem:[%s2 + $0x100] sm:$0xff]
    %v303 = vld [vmem:[%s2 + $0x108] sm:$0xff]
    %v304 = vld [vmem:[%s2 + $0x110] sm:$0xff]
    %v305 = vld [vmem:[%s2 + $0x118] sm:$0xff]
    %v306 = vld [vmem:[%s2 + $0x120] sm:$0xff]
    %v307 = vld [vmem:[%s2 + $0x128] sm:$0xff]
    %v308 = vld [vmem:[%s2 + $0x130] sm:$0xff]
    %v309 = vld [vmem:[%s2 + $0x138] sm:$0xff]
    %v311 = vsel %vm83, %v294, 0
    %v314 = vsel %vm83, %v295, 0
    %v317 = vsel %vm83, %v296, 0
    %v320 = vsel %vm83, %v297, 0
    %v323 = vsel %vm83, %v298, 0
    %v326 = vsel %vm83, %v299, 0
    %v329 = vsel %vm83, %v300, 0
    %v332 = vsel %vm83, %v301, 0
    %v335 = vsel %vm83, %v302, 0
    %v338 = vsel %vm83, %v303, 0
    %v341 = vsel %vm83, %v304, 0
    %v344 = vsel %vm83, %v305, 0
    %v347 = vsel %vm83, %v306, 0
    %v350 = vsel %vm83, %v307, 0
    %v353 = vsel %vm83, %v308, 0
    %v356 = vsel %vm83, %v309, 0
    %358 = vmatprep.subr.mxu0 0.0
    %359 = vmatpush1.msra.mxu0 %v276
    %360 = vmatprep.subr.mxu0 0.0
    %361 = vmatpush1.msra.mxu0 %v281
    %362 = vmatprep.subr.mxu0 0.0
    %363 = vmatpush1.msra.mxu0 %v286
    %364 = vmatprep.subr.mxu0 0.0
    %365 = vmatpush1.msra.mxu0 %v291
    %366 = vmatprep.subr.mxu0 0.0
    %367 = vmatpush1.msra.mxu0 0.0
    %368 = vmatprep.subr.mxu0 0.0
    %369 = vmatpush1.msra.mxu0 0.0
    %370 = vmatprep.subr.mxu0 0.0
    %371 = vmatpush1.msra.mxu0 0.0
    %372 = vmatprep.subr.mxu0 0.0
    %373 = vmatpush1.msra.mxu0 0.0
    %374 = vmatprep.subr.mxu0 0.0
    %375 = vmatpush1.msra.mxu0 0.0
    %376 = vmatprep.subr.mxu0 0.0
    %377 = vmatpush1.msra.mxu0 0.0
    %378 = vmatprep.subr.mxu0 0.0
    %379 = vmatpush1.msra.mxu0 0.0
    %380 = vmatprep.subr.mxu0 0.0
    %381 = vmatpush1.msra.mxu0 0.0
    %382 = vmatprep.subr.mxu0 0.0
    %383 = vmatpush1.msra.mxu0 0.0
    %384 = vmatprep.subr.mxu0 0.0
    %385 = vmatpush1.msra.mxu0 0.0
    %386 = vmatprep.subr.mxu0 0.0
    %387 = vmatpush1.msra.mxu0 0.0
    %388 = vmatprep.subr.mxu0 0.0
    %389 = vmatpush1.msra.mxu0 0.0
    %390 = vmatprep.subr.mxu0 0.0
    %391 = vmatpush1.msra.mxu0 0.0
    %392 = vmatprep.subr.mxu0 0.0
    %393 = vmatpush1.msra.mxu0 0.0
    %394 = vmatprep.subr.mxu0 0.0
    %395 = vmatpush1.msra.mxu0 0.0
    %396 = vmatprep.subr.mxu0 0.0
    %397 = vmatpush1.msra.mxu0 0.0
    %398 = vmatprep.subr.mxu0 0.0
    %399 = vmatpush1.msra.mxu0 0.0
    %400 = vmatprep.subr.mxu0 0.0
    %401 = vmatpush1.msra.mxu0 0.0
    %402 = vmatprep.subr.mxu0 0.0
    %403 = vmatpush1.msra.mxu0 0.0
    %404 = vmatprep.subr.mxu0 0.0
    %405 = vmatpush1.msra.mxu0 0.0
    %406 = vmatprep.subr.mxu0 0.0
    %407 = vmatpush1.msra.mxu0 0.0
    %408 = vmatprep.subr.mxu0 0.0
    %409 = vmatpush1.msra.mxu0 0.0
    %410 = vmatprep.subr.mxu0 0.0
    %411 = vmatpush1.msra.mxu0 0.0
    %412 = vmatprep.subr.mxu0 0.0
    %413 = vmatpush1.msra.mxu0 0.0
    %414 = vmatprep.subr.mxu0 0.0
    %415 = vmatpush1.msra.mxu0 0.0
    %416 = vmatprep.subr.mxu0 0.0
    %417 = vmatpush1.msra.mxu0 0.0
    %418 = vmatprep.subr.mxu0 0.0
    %419 = vmatpush1.msra.mxu0 0.0
    %420 = vmatprep.subr.mxu0 0.0
    %421 = vmatpush1.msra.mxu0 0.0
    %422 = vmatprep.mubr.f32.mxu0 0.0
    %423 = vmatmul.mubr.f32.gmra.mrb[0].mxu0 %v311
    %v424 = vpop.f32.mrb[0].mxu0
    %v425 = vadd.f32 0.0, %v424
    %v426 = vpop.f32.mrb[0].mxu0
    %427 = vmatprep.mubr.f32.mxu0 0.0
    %428 = vmatmul.mubr.f32.gmra.mrb[0].mxu0 %v314
    %v429 = vpop.f32.mrb[0].mxu0
    %v430 = vadd.f32 0.0, %v429
    %v431 = vpop.f32.mrb[0].mxu0
    %432 = vmatprep.mubr.f32.mxu0 0.0
    %433 = vmatmul.mubr.f32.gmra.mrb[0].mxu0 %v317
    %v434 = vpop.f32.mrb[0].mxu0
    %v435 = vadd.f32 0.0, %v434
    %v436 = vpop.f32.mrb[0].mxu0
    %437 = vmatprep.mubr.f32.mxu0 0.0
    %438 = vmatmul.mubr.f32.gmra.mrb[0].mxu0 %v320
    %v439 = vpop.f32.mrb[0].mxu0
    %v440 = vadd.f32 0.0, %v439
    %v441 = vpop.f32.mrb[0].mxu0
    %442 = vmatprep.mubr.f32.mxu0 0.0
    %443 = vmatmul.mubr.f32.gmra.mrb[0].mxu0 %v323
    %v444 = vpop.f32.mrb[0].mxu0
    %v445 = vadd.f32 0.0, %v444
    %v446 = vpop.f32.mrb[0].mxu0
    %447 = vmatprep.mubr.f32.mxu0 0.0
    %448 = vmatmul.mubr.f32.gmra.mrb[0].mxu0 %v326
    %v449 = vpop.f32.mrb[0].mxu0
    %v450 = vadd.f32 0.0, %v449
    %v451 = vpop.f32.mrb[0].mxu0
    %452 = vmatprep.mubr.f32.mxu0 0.0
    %453 = vmatmul.mubr.f32.gmra.mrb[0].mxu0 %v329
    %v454 = vpop.f32.mrb[0].mxu0
    %v455 = vadd.f32 0.0, %v454
    %v456 = vpop.f32.mrb[0].mxu0
    %457 = vmatprep.mubr.f32.mxu0 0.0
    %458 = vmatmul.mubr.f32.gmra.mrb[0].mxu0 %v332
    %v459 = vpop.f32.mrb[0].mxu0
    %v460 = vadd.f32 0.0, %v459
    %v461 = vpop.f32.mrb[0].mxu0
    %462 = vmatprep.mubr.f32.mxu0 0.0
    %463 = vmatmul.mubr.f32.gmra.mrb[0].mxu0 %v335
    %v464 = vpop.f32.mrb[0].mxu0
    %v465 = vadd.f32 0.0, %v464
    %v466 = vpop.f32.mrb[0].mxu0
    %467 = vmatprep.mubr.f32.mxu0 0.0
    %468 = vmatmul.mubr.f32.gmra.mrb[0].mxu0 %v338
    %v469 = vpop.f32.mrb[0].mxu0
    %v470 = vadd.f32 0.0, %v469
    %v471 = vpop.f32.mrb[0].mxu0
    %472 = vmatprep.mubr.f32.mxu0 0.0
    %473 = vmatmul.mubr.f32.gmra.mrb[0].mxu0 %v341
    %v474 = vpop.f32.mrb[0].mxu0
    %v475 = vadd.f32 0.0, %v474
    %v476 = vpop.f32.mrb[0].mxu0
    %477 = vmatprep.mubr.f32.mxu0 0.0
    %478 = vmatmul.mubr.f32.gmra.mrb[0].mxu0 %v344
    %v479 = vpop.f32.mrb[0].mxu0
    %v480 = vadd.f32 0.0, %v479
    %v481 = vpop.f32.mrb[0].mxu0
    %482 = vmatprep.mubr.f32.mxu0 0.0
    %483 = vmatmul.mubr.f32.gmra.mrb[0].mxu0 %v347
    %v484 = vpop.f32.mrb[0].mxu0
    %v485 = vadd.f32 0.0, %v484
    %v486 = vpop.f32.mrb[0].mxu0
    %487 = vmatprep.mubr.f32.mxu0 0.0
    %488 = vmatmul.mubr.f32.gmra.mrb[0].mxu0 %v350
    %v489 = vpop.f32.mrb[0].mxu0
    %v490 = vadd.f32 0.0, %v489
    %v491 = vpop.f32.mrb[0].mxu0
    %492 = vmatprep.mubr.f32.mxu0 0.0
    %493 = vmatmul.mubr.f32.gmra.mrb[0].mxu0 %v353
    %v494 = vpop.f32.mrb[0].mxu0
    %v495 = vadd.f32 0.0, %v494
    %v496 = vpop.f32.mrb[0].mxu0
    %497 = vmatprep.mubr.f32.mxu0 0.0
    %498 = vmatmul.mubr.f32.gmra.mrb[0].mxu0 %v356
    %v499 = vpop.f32.mrb[0].mxu0
    %v500 = vadd.f32 0.0, %v499
    %v501 = vpop.f32.mrb[0].mxu0
    %502 = vdwg.mxu0
    %v504 = vsel %vm83, %v181, 0
    %v507 = vsel %vm83, %v182, 0
    %v510 = vsel %vm83, %v183, 0
    %v513 = vsel %vm83, %v184, 0
    %v516 = vsel %vm83, %v185, 0
    %v519 = vsel %vm83, %v186, 0
    %v522 = vsel %vm83, %v187, 0
    %v525 = vsel %vm83, %v188, 0
    %v528 = vsel %vm83, %v189, 0
    %v531 = vsel %vm83, %v190, 0
    %v534 = vsel %vm83, %v191, 0
    %v537 = vsel %vm83, %v192, 0
    %v540 = vsel %vm83, %v193, 0
    %v543 = vsel %vm83, %v194, 0
    %v546 = vsel %vm83, %v195, 0
    %v549 = vsel %vm83, %v196, 0
    %551 = vmatprep.subr.mxu0 0.0
    %552 = vmatpush1.msra.mxu0 %v163
    %553 = vmatprep.subr.mxu0 0.0
    %554 = vmatpush1.msra.mxu0 %v168
    %555 = vmatprep.subr.mxu0 0.0
    %556 = vmatpush1.msra.mxu0 %v173
    %557 = vmatprep.subr.mxu0 0.0
    %558 = vmatpush1.msra.mxu0 %v178
    %559 = vmatprep.subr.mxu0 0.0
    %560 = vmatpush1.msra.mxu0 0.0
    %561 = vmatprep.subr.mxu0 0.0
    %562 = vmatpush1.msra.mxu0 0.0
    %563 = vmatprep.subr.mxu0 0.0
    %564 = vmatpush1.msra.mxu0 0.0
    %565 = vmatprep.subr.mxu0 0.0
    %566 = vmatpush1.msra.mxu0 0.0
    %567 = vmatprep.subr.mxu0 0.0
    %568 = vmatpush1.msra.mxu0 0.0
    %569 = vmatprep.subr.mxu0 0.0
    %570 = vmatpush1.msra.mxu0 0.0
    %571 = vmatprep.subr.mxu0 0.0
    %572 = vmatpush1.msra.mxu0 0.0
    %573 = vmatprep.subr.mxu0 0.0
    %574 = vmatpush1.msra.mxu0 0.0
    %575 = vmatprep.subr.mxu0 0.0
    %576 = vmatpush1.msra.mxu0 0.0
    %577 = vmatprep.subr.mxu0 0.0
    %578 = vmatpush1.msra.mxu0 0.0
    %579 = vmatprep.subr.mxu0 0.0
    %580 = vmatpush1.msra.mxu0 0.0
    %581 = vmatprep.subr.mxu0 0.0
    %582 = vmatpush1.msra.mxu0 0.0
    %583 = vmatprep.subr.mxu0 0.0
    %584 = vmatpush1.msra.mxu0 0.0
    %585 = vmatprep.subr.mxu0 0.0
    %586 = vmatpush1.msra.mxu0 0.0
    %587 = vmatprep.subr.mxu0 0.0
    %588 = vmatpush1.msra.mxu0 0.0
    %589 = vmatprep.subr.mxu0 0.0
    %590 = vmatpush1.msra.mxu0 0.0
    %591 = vmatprep.subr.mxu0 0.0
    %592 = vmatpush1.msra.mxu0 0.0
    %593 = vmatprep.subr.mxu0 0.0
    %594 = vmatpush1.msra.mxu0 0.0
    %595 = vmatprep.subr.mxu0 0.0
    %596 = vmatpush1.msra.mxu0 0.0
    %597 = vmatprep.subr.mxu0 0.0
    %598 = vmatpush1.msra.mxu0 0.0
    %599 = vmatprep.subr.mxu0 0.0
    %600 = vmatpush1.msra.mxu0 0.0
    %601 = vmatprep.subr.mxu0 0.0
    %602 = vmatpush1.msra.mxu0 0.0
    %603 = vmatprep.subr.mxu0 0.0
    %604 = vmatpush1.msra.mxu0 0.0
    %605 = vmatprep.subr.mxu0 0.0
    %606 = vmatpush1.msra.mxu0 0.0
    %607 = vmatprep.subr.mxu0 0.0
    %608 = vmatpush1.msra.mxu0 0.0
    %609 = vmatprep.subr.mxu0 0.0
    %610 = vmatpush1.msra.mxu0 0.0
    %611 = vmatprep.subr.mxu0 0.0
    %612 = vmatpush1.msra.mxu0 0.0
    %613 = vmatprep.subr.mxu0 0.0
    %614 = vmatpush1.msra.mxu0 0.0
    %615 = vmatprep.mubr.f32.mxu0 0.0
    %616 = vmatmul.mubr.f32.gmra.mrb[0].mxu0 %v504
    %v617 = vpop.f32.mrb[0].mxu0
    %v618 = vadd.f32 %v425, %v617
    %v619 = vpop.f32.mrb[0].mxu0
    %620 = vmatprep.mubr.f32.mxu0 0.0
    %621 = vmatmul.mubr.f32.gmra.mrb[0].mxu0 %v507
    %v622 = vpop.f32.mrb[0].mxu0
    %v623 = vadd.f32 %v430, %v622
    %v624 = vpop.f32.mrb[0].mxu0
    %625 = vmatprep.mubr.f32.mxu0 0.0
    %626 = vmatmul.mubr.f32.gmra.mrb[0].mxu0 %v510
    %v627 = vpop.f32.mrb[0].mxu0
    %v628 = vadd.f32 %v435, %v627
    %v629 = vpop.f32.mrb[0].mxu0
    %630 = vmatprep.mubr.f32.mxu0 0.0
    %631 = vmatmul.mubr.f32.gmra.mrb[0].mxu0 %v513
    %v632 = vpop.f32.mrb[0].mxu0
    %v633 = vadd.f32 %v440, %v632
    %v634 = vpop.f32.mrb[0].mxu0
    %635 = vmatprep.mubr.f32.mxu0 0.0
    %636 = vmatmul.mubr.f32.gmra.mrb[0].mxu0 %v516
    %v637 = vpop.f32.mrb[0].mxu0
    %v638 = vadd.f32 %v445, %v637
    %v639 = vpop.f32.mrb[0].mxu0
    %640 = vmatprep.mubr.f32.mxu0 0.0
    %641 = vmatmul.mubr.f32.gmra.mrb[0].mxu0 %v519
    %v642 = vpop.f32.mrb[0].mxu0
    %v643 = vadd.f32 %v450, %v642
    %v644 = vpop.f32.mrb[0].mxu0
    %645 = vmatprep.mubr.f32.mxu0 0.0
    %646 = vmatmul.mubr.f32.gmra.mrb[0].mxu0 %v522
    %v647 = vpop.f32.mrb[0].mxu0
    %v648 = vadd.f32 %v455, %v647
    %v649 = vpop.f32.mrb[0].mxu0
    %650 = vmatprep.mubr.f32.mxu0 0.0
    %651 = vmatmul.mubr.f32.gmra.mrb[0].mxu0 %v525
    %v652 = vpop.f32.mrb[0].mxu0
    %v653 = vadd.f32 %v460, %v652
    %v654 = vpop.f32.mrb[0].mxu0
    %655 = vmatprep.mubr.f32.mxu0 0.0
    %656 = vmatmul.mubr.f32.gmra.mrb[0].mxu0 %v528
    %v657 = vpop.f32.mrb[0].mxu0
    %v658 = vadd.f32 %v465, %v657
    %v659 = vpop.f32.mrb[0].mxu0
    %660 = vmatprep.mubr.f32.mxu0 0.0
    %661 = vmatmul.mubr.f32.gmra.mrb[0].mxu0 %v531
    %v662 = vpop.f32.mrb[0].mxu0
    %v663 = vadd.f32 %v470, %v662
    %v664 = vpop.f32.mrb[0].mxu0
    %665 = vmatprep.mubr.f32.mxu0 0.0
    %666 = vmatmul.mubr.f32.gmra.mrb[0].mxu0 %v534
    %v667 = vpop.f32.mrb[0].mxu0
    %v668 = vadd.f32 %v475, %v667
    %v669 = vpop.f32.mrb[0].mxu0
    %670 = vmatprep.mubr.f32.mxu0 0.0
    %671 = vmatmul.mubr.f32.gmra.mrb[0].mxu0 %v537
    %v672 = vpop.f32.mrb[0].mxu0
    %v673 = vadd.f32 %v480, %v672
    %v674 = vpop.f32.mrb[0].mxu0
    %675 = vmatprep.mubr.f32.mxu0 0.0
    %676 = vmatmul.mubr.f32.gmra.mrb[0].mxu0 %v540
    %v677 = vpop.f32.mrb[0].mxu0
    %v678 = vadd.f32 %v485, %v677
    %v679 = vpop.f32.mrb[0].mxu0
    %680 = vmatprep.mubr.f32.mxu0 0.0
    %681 = vmatmul.mubr.f32.gmra.mrb[0].mxu0 %v543
    %v682 = vpop.f32.mrb[0].mxu0
    %v683 = vadd.f32 %v490, %v682
    %v684 = vpop.f32.mrb[0].mxu0
    %685 = vmatprep.mubr.f32.mxu0 0.0
    %686 = vmatmul.mubr.f32.gmra.mrb[0].mxu0 %v546
    %v687 = vpop.f32.mrb[0].mxu0
    %v688 = vadd.f32 %v495, %v687
    %v689 = vpop.f32.mrb[0].mxu0
    %690 = vmatprep.mubr.f32.mxu0 0.0
    %691 = vmatmul.mubr.f32.gmra.mrb[0].mxu0 %v549
    %v692 = vpop.f32.mrb[0].mxu0
    %v693 = vadd.f32 %v500, %v692
    %v694 = vpop.f32.mrb[0].mxu0
    %695 = vdwg.mxu0
    %696 = vmatprep.subr.mxu0 0.0
    %697 = vmatpush1.msra.mxu0 %v276
    %698 = vmatprep.subr.mxu0 0.0
    %699 = vmatpush1.msra.mxu0 %v281
    %700 = vmatprep.subr.mxu0 0.0
    %701 = vmatpush1.msra.mxu0 %v286
    %702 = vmatprep.subr.mxu0 0.0
    %703 = vmatpush1.msra.mxu0 %v291
    %704 = vmatprep.subr.mxu0 0.0
    %705 = vmatpush1.msra.mxu0 0.0
    %706 = vmatprep.subr.mxu0 0.0
    %707 = vmatpush1.msra.mxu0 0.0
    %708 = vmatprep.subr.mxu0 0.0
    %709 = vmatpush1.msra.mxu0 0.0
    %710 = vmatprep.subr.mxu0 0.0
    %711 = vmatpush1.msra.mxu0 0.0
    %712 = vmatprep.subr.mxu0 0.0
    %713 = vmatpush1.msra.mxu0 0.0
    %714 = vmatprep.subr.mxu0 0.0
    %715 = vmatpush1.msra.mxu0 0.0
    %716 = vmatprep.subr.mxu0 0.0
    %717 = vmatpush1.msra.mxu0 0.0
    %718 = vmatprep.subr.mxu0 0.0
    %719 = vmatpush1.msra.mxu0 0.0
    %720 = vmatprep.subr.mxu0 0.0
    %721 = vmatpush1.msra.mxu0 0.0
    %722 = vmatprep.subr.mxu0 0.0
    %723 = vmatpush1.msra.mxu0 0.0
    %724 = vmatprep.subr.mxu0 0.0
    %725 = vmatpush1.msra.mxu0 0.0
    %726 = vmatprep.subr.mxu0 0.0
    %727 = vmatpush1.msra.mxu0 0.0
    %728 = vmatprep.subr.mxu0 0.0
    %729 = vmatpush1.msra.mxu0 0.0
    %730 = vmatprep.subr.mxu0 0.0
    %731 = vmatpush1.msra.mxu0 0.0
    %732 = vmatprep.subr.mxu0 0.0
    %733 = vmatpush1.msra.mxu0 0.0
    %734 = vmatprep.subr.mxu0 0.0
    %735 = vmatpush1.msra.mxu0 0.0
    %736 = vmatprep.subr.mxu0 0.0
    %737 = vmatpush1.msra.mxu0 0.0
    %738 = vmatprep.subr.mxu0 0.0
    %739 = vmatpush1.msra.mxu0 0.0
    %740 = vmatprep.subr.mxu0 0.0
    %741 = vmatpush1.msra.mxu0 0.0
    %742 = vmatprep.subr.mxu0 0.0
    %743 = vmatpush1.msra.mxu0 0.0
    %744 = vmatprep.subr.mxu0 0.0
    %745 = vmatpush1.msra.mxu0 0.0
    %746 = vmatprep.subr.mxu0 0.0
    %747 = vmatpush1.msra.mxu0 0.0
    %748 = vmatprep.subr.mxu0 0.0
    %749 = vmatpush1.msra.mxu0 0.0
    %750 = vmatprep.subr.mxu0 0.0
    %751 = vmatpush1.msra.mxu0 0.0
    %752 = vmatprep.subr.mxu0 0.0
    %753 = vmatpush1.msra.mxu0 0.0
    %754 = vmatprep.subr.mxu0 0.0
    %755 = vmatpush1.msra.mxu0 0.0
    %756 = vmatprep.subr.mxu0 0.0
    %757 = vmatpush1.msra.mxu0 0.0
    %758 = vmatprep.subr.mxu0 0.0
    %759 = vmatpush1.msra.mxu0 0.0
    %760 = vmatprep.mubr.f32.mxu0 0.0
    %761 = vmatmul.mubr.f32.gmra.mrb[0].mxu0 %v198
    %v762 = vpop.f32.mrb[0].mxu0
    %v763 = vadd.f32 0.0, %v762
    %v764 = vpop.f32.mrb[0].mxu0
    %765 = vmatprep.mubr.f32.mxu0 0.0
    %766 = vmatmul.mubr.f32.gmra.mrb[0].mxu0 %v201
    %v767 = vpop.f32.mrb[0].mxu0
    %v768 = vadd.f32 0.0, %v767
    %v769 = vpop.f32.mrb[0].mxu0
    %770 = vmatprep.mubr.f32.mxu0 0.0
    %771 = vmatmul.mubr.f32.gmra.mrb[0].mxu0 %v204
    %v772 = vpop.f32.mrb[0].mxu0
    %v773 = vadd.f32 0.0, %v772
    %v774 = vpop.f32.mrb[0].mxu0
    %775 = vmatprep.mubr.f32.mxu0 0.0
    %776 = vmatmul.mubr.f32.gmra.mrb[0].mxu0 %v207
    %v777 = vpop.f32.mrb[0].mxu0
    %v778 = vadd.f32 0.0, %v777
    %v779 = vpop.f32.mrb[0].mxu0
    %780 = vdwg.mxu0
    %v781 = vmul.f32 %v763, 2.0
    %v782 = vmul.f32 %v768, 2.0
    %v783 = vmul.f32 %v773, 2.0
    %v784 = vmul.f32 %v778, 2.0
    %v785 = vsub.f32 %v781, %v163
    %v786 = vsub.f32 %v782, %v168
    %v787 = vsub.f32 %v783, %v173
    %v788 = vsub.f32 %v784, %v178
    %v789 = vld [vmem:[%s2 + $0x140] sm:$0xff]
    %v790 = vld [vmem:[%s2 + $0x148] sm:$0xff]
    %v791 = vld [vmem:[%s2 + $0x150] sm:$0xff]
    %v792 = vld [vmem:[%s2 + $0x158] sm:$0xff]
    %v793 = vld [vmem:[%s2 + $0x160] sm:$0xff]
    %v794 = vld [vmem:[%s2 + $0x168] sm:$0xff]
    %v795 = vld [vmem:[%s2 + $0x170] sm:$0xff]
    %v796 = vld [vmem:[%s2 + $0x178] sm:$0xff]
    %v797 = vld [vmem:[%s2 + $0x180] sm:$0xff]
    %v798 = vld [vmem:[%s2 + $0x188] sm:$0xff]
    %v799 = vld [vmem:[%s2 + $0x190] sm:$0xff]
    %v800 = vld [vmem:[%s2 + $0x198] sm:$0xff]
    %v801 = vld [vmem:[%s2 + $0x1a0] sm:$0xff]
    %v802 = vld [vmem:[%s2 + $0x1a8] sm:$0xff]
    %v803 = vld [vmem:[%s2 + $0x1b0] sm:$0xff]
    %v804 = vld [vmem:[%s2 + $0x1b8] sm:$0xff]
    %v806 = vsel %vm83, %v789, 0
    %v809 = vsel %vm83, %v790, 0
    %v812 = vsel %vm83, %v791, 0
    %v815 = vsel %vm83, %v792, 0
    %v818 = vsel %vm83, %v793, 0
    %v821 = vsel %vm83, %v794, 0
    %v824 = vsel %vm83, %v795, 0
    %v827 = vsel %vm83, %v796, 0
    %v830 = vsel %vm83, %v797, 0
    %v833 = vsel %vm83, %v798, 0
    %v836 = vsel %vm83, %v799, 0
    %v839 = vsel %vm83, %v800, 0
    %v842 = vsel %vm83, %v801, 0
    %v845 = vsel %vm83, %v802, 0
    %v848 = vsel %vm83, %v803, 0
    %v851 = vsel %vm83, %v804, 0
    %853 = vmatprep.subr.mxu0 0.0
    %854 = vmatpush1.msra.mxu0 %v785
    %855 = vmatprep.subr.mxu0 0.0
    %856 = vmatpush1.msra.mxu0 %v786
    %857 = vmatprep.subr.mxu0 0.0
    %858 = vmatpush1.msra.mxu0 %v787
    %859 = vmatprep.subr.mxu0 0.0
    %860 = vmatpush1.msra.mxu0 %v788
    %861 = vmatprep.subr.mxu0 0.0
    %862 = vmatpush1.msra.mxu0 0.0
    %863 = vmatprep.subr.mxu0 0.0
    %864 = vmatpush1.msra.mxu0 0.0
    %865 = vmatprep.subr.mxu0 0.0
    %866 = vmatpush1.msra.mxu0 0.0
    %867 = vmatprep.subr.mxu0 0.0
    %868 = vmatpush1.msra.mxu0 0.0
    %869 = vmatprep.subr.mxu0 0.0
    %870 = vmatpush1.msra.mxu0 0.0
    %871 = vmatprep.subr.mxu0 0.0
    %872 = vmatpush1.msra.mxu0 0.0
    %873 = vmatprep.subr.mxu0 0.0
    %874 = vmatpush1.msra.mxu0 0.0
    %875 = vmatprep.subr.mxu0 0.0
    %876 = vmatpush1.msra.mxu0 0.0
    %877 = vmatprep.subr.mxu0 0.0
    %878 = vmatpush1.msra.mxu0 0.0
    %879 = vmatprep.subr.mxu0 0.0
    %880 = vmatpush1.msra.mxu0 0.0
    %881 = vmatprep.subr.mxu0 0.0
    %882 = vmatpush1.msra.mxu0 0.0
    %883 = vmatprep.subr.mxu0 0.0
    %884 = vmatpush1.msra.mxu0 0.0
    %885 = vmatprep.subr.mxu0 0.0
    %886 = vmatpush1.msra.mxu0 0.0
    %887 = vmatprep.subr.mxu0 0.0
    %888 = vmatpush1.msra.mxu0 0.0
    %889 = vmatprep.subr.mxu0 0.0
    %890 = vmatpush1.msra.mxu0 0.0
    %891 = vmatprep.subr.mxu0 0.0
    %892 = vmatpush1.msra.mxu0 0.0
    %893 = vmatprep.subr.mxu0 0.0
    %894 = vmatpush1.msra.mxu0 0.0
    %895 = vmatprep.subr.mxu0 0.0
    %896 = vmatpush1.msra.mxu0 0.0
    %897 = vmatprep.subr.mxu0 0.0
    %898 = vmatpush1.msra.mxu0 0.0
    %899 = vmatprep.subr.mxu0 0.0
    %900 = vmatpush1.msra.mxu0 0.0
    %901 = vmatprep.subr.mxu0 0.0
    %902 = vmatpush1.msra.mxu0 0.0
    %903 = vmatprep.subr.mxu0 0.0
    %904 = vmatpush1.msra.mxu0 0.0
    %905 = vmatprep.subr.mxu0 0.0
    %906 = vmatpush1.msra.mxu0 0.0
    %907 = vmatprep.subr.mxu0 0.0
    %908 = vmatpush1.msra.mxu0 0.0
    %909 = vmatprep.subr.mxu0 0.0
    %910 = vmatpush1.msra.mxu0 0.0
    %911 = vmatprep.subr.mxu0 0.0
    %912 = vmatpush1.msra.mxu0 0.0
    %913 = vmatprep.subr.mxu0 0.0
    %914 = vmatpush1.msra.mxu0 0.0
    %915 = vmatprep.subr.mxu0 0.0
    %916 = vmatpush1.msra.mxu0 0.0
    %917 = vmatprep.mubr.f32.mxu0 0.0
    %918 = vmatmul.mubr.f32.gmra.mrb[0].mxu0 %v806
    %v919 = vpop.f32.mrb[0].mxu0
    %v920 = vadd.f32 0.0, %v919
    %v921 = vpop.f32.mrb[0].mxu0
    %922 = vmatprep.mubr.f32.mxu0 0.0
    %923 = vmatmul.mubr.f32.gmra.mrb[0].mxu0 %v809
    %v924 = vpop.f32.mrb[0].mxu0
    %v925 = vadd.f32 0.0, %v924
    %v926 = vpop.f32.mrb[0].mxu0
    %927 = vmatprep.mubr.f32.mxu0 0.0
    %928 = vmatmul.mubr.f32.gmra.mrb[0].mxu0 %v812
    %v929 = vpop.f32.mrb[0].mxu0
    %v930 = vadd.f32 0.0, %v929
    %v931 = vpop.f32.mrb[0].mxu0
    %932 = vmatprep.mubr.f32.mxu0 0.0
    %933 = vmatmul.mubr.f32.gmra.mrb[0].mxu0 %v815
    %v934 = vpop.f32.mrb[0].mxu0
    %v935 = vadd.f32 0.0, %v934
    %v936 = vpop.f32.mrb[0].mxu0
    %937 = vmatprep.mubr.f32.mxu0 0.0
    %938 = vmatmul.mubr.f32.gmra.mrb[0].mxu0 %v818
    %v939 = vpop.f32.mrb[0].mxu0
    %v940 = vadd.f32 0.0, %v939
    %v941 = vpop.f32.mrb[0].mxu0
    %942 = vmatprep.mubr.f32.mxu0 0.0
    %943 = vmatmul.mubr.f32.gmra.mrb[0].mxu0 %v821
    %v944 = vpop.f32.mrb[0].mxu0
    %v945 = vadd.f32 0.0, %v944
    %v946 = vpop.f32.mrb[0].mxu0
    %947 = vmatprep.mubr.f32.mxu0 0.0
    %948 = vmatmul.mubr.f32.gmra.mrb[0].mxu0 %v824
    %v949 = vpop.f32.mrb[0].mxu0
    %v950 = vadd.f32 0.0, %v949
    %v951 = vpop.f32.mrb[0].mxu0
    %952 = vmatprep.mubr.f32.mxu0 0.0
    %953 = vmatmul.mubr.f32.gmra.mrb[0].mxu0 %v827
    %v954 = vpop.f32.mrb[0].mxu0
    %v955 = vadd.f32 0.0, %v954
    %v956 = vpop.f32.mrb[0].mxu0
    %957 = vmatprep.mubr.f32.mxu0 0.0
    %958 = vmatmul.mubr.f32.gmra.mrb[0].mxu0 %v830
    %v959 = vpop.f32.mrb[0].mxu0
    %v960 = vadd.f32 0.0, %v959
    %v961 = vpop.f32.mrb[0].mxu0
    %962 = vmatprep.mubr.f32.mxu0 0.0
    %963 = vmatmul.mubr.f32.gmra.mrb[0].mxu0 %v833
    %v964 = vpop.f32.mrb[0].mxu0
    %v965 = vadd.f32 0.0, %v964
    %v966 = vpop.f32.mrb[0].mxu0
    %967 = vmatprep.mubr.f32.mxu0 0.0
    %968 = vmatmul.mubr.f32.gmra.mrb[0].mxu0 %v836
    %v969 = vpop.f32.mrb[0].mxu0
    %v970 = vadd.f32 0.0, %v969
    %v971 = vpop.f32.mrb[0].mxu0
    %972 = vmatprep.mubr.f32.mxu0 0.0
    %973 = vmatmul.mubr.f32.gmra.mrb[0].mxu0 %v839
    %v974 = vpop.f32.mrb[0].mxu0
    %v975 = vadd.f32 0.0, %v974
    %v976 = vpop.f32.mrb[0].mxu0
    %977 = vmatprep.mubr.f32.mxu0 0.0
    %978 = vmatmul.mubr.f32.gmra.mrb[0].mxu0 %v842
    %v979 = vpop.f32.mrb[0].mxu0
    %v980 = vadd.f32 0.0, %v979
    %v981 = vpop.f32.mrb[0].mxu0
    %982 = vmatprep.mubr.f32.mxu0 0.0
    %983 = vmatmul.mubr.f32.gmra.mrb[0].mxu0 %v845
    %v984 = vpop.f32.mrb[0].mxu0
    %v985 = vadd.f32 0.0, %v984
    %v986 = vpop.f32.mrb[0].mxu0
    %987 = vmatprep.mubr.f32.mxu0 0.0
    %988 = vmatmul.mubr.f32.gmra.mrb[0].mxu0 %v848
    %v989 = vpop.f32.mrb[0].mxu0
    %v990 = vadd.f32 0.0, %v989
    %v991 = vpop.f32.mrb[0].mxu0
    %992 = vmatprep.mubr.f32.mxu0 0.0
    %993 = vmatmul.mubr.f32.gmra.mrb[0].mxu0 %v851
    %v994 = vpop.f32.mrb[0].mxu0
    %v995 = vadd.f32 0.0, %v994
    %v996 = vpop.f32.mrb[0].mxu0
    %997 = vdwg.mxu0
    %v998 = vadd.f32 %v618, %v920
    %v999 = vadd.f32 %v623, %v925
    %v1000 = vadd.f32 %v628, %v930
    %v1001 = vadd.f32 %v633, %v935
    %v1002 = vadd.f32 %v638, %v940
    %v1003 = vadd.f32 %v643, %v945
    %v1004 = vadd.f32 %v648, %v950
    %v1005 = vadd.f32 %v653, %v955
    %v1006 = vadd.f32 %v658, %v960
    %v1007 = vadd.f32 %v663, %v965
    %v1008 = vadd.f32 %v668, %v970
    %v1009 = vadd.f32 %v673, %v975
    %v1010 = vadd.f32 %v678, %v980
    %v1011 = vadd.f32 %v683, %v985
    %v1012 = vadd.f32 %v688, %v990
    %v1013 = vadd.f32 %v693, %v995
    %1015 = vset.pattern.permute.xlu0 0
    %1016 = vperm.xlu0 %1015, %v59
    %v1017 = vpop.permute.xlu0 %1016
    %1020 = vset.pattern.permute.xlu0 0
    %1021 = vperm.xlu0 %1020, %v60
    %v1022 = vpop.permute.xlu0 %1021
    %1025 = vset.pattern.permute.xlu0 0
    %1026 = vperm.xlu0 %1025, %v61
    %v1027 = vpop.permute.xlu0 %1026
    %1030 = vset.pattern.permute.xlu0 0
    %1031 = vperm.xlu0 %1030, %v62
    %v1032 = vpop.permute.xlu0 %1031
    %1035 = vset.pattern.permute.xlu0 0
    %1036 = vperm.xlu0 %1035, %v63
    %v1037 = vpop.permute.xlu0 %1036
    %1040 = vset.pattern.permute.xlu0 0
    %1041 = vperm.xlu0 %1040, %v64
    %v1042 = vpop.permute.xlu0 %1041
    %1045 = vset.pattern.permute.xlu0 0
    %1046 = vperm.xlu0 %1045, %v65
    %v1047 = vpop.permute.xlu0 %1046
    %1050 = vset.pattern.permute.xlu0 0
    %1051 = vperm.xlu0 %1050, %v66
    %v1052 = vpop.permute.xlu0 %1051
    %1055 = vset.pattern.permute.xlu0 0
    %1056 = vperm.xlu0 %1055, %v67
    %v1057 = vpop.permute.xlu0 %1056
    %1060 = vset.pattern.permute.xlu0 0
    %1061 = vperm.xlu0 %1060, %v68
    %v1062 = vpop.permute.xlu0 %1061
    %1065 = vset.pattern.permute.xlu0 0
    %1066 = vperm.xlu0 %1065, %v69
    %v1067 = vpop.permute.xlu0 %1066
    %1070 = vset.pattern.permute.xlu0 0
    %1071 = vperm.xlu0 %1070, %v70
    %v1072 = vpop.permute.xlu0 %1071
    %1075 = vset.pattern.permute.xlu0 0
    %1076 = vperm.xlu0 %1075, %v71
    %v1077 = vpop.permute.xlu0 %1076
    %1080 = vset.pattern.permute.xlu0 0
    %1081 = vperm.xlu0 %1080, %v72
    %v1082 = vpop.permute.xlu0 %1081
    %1085 = vset.pattern.permute.xlu0 0
    %1086 = vperm.xlu0 %1085, %v73
    %v1087 = vpop.permute.xlu0 %1086
    %1090 = vset.pattern.permute.xlu0 0
    %1091 = vperm.xlu0 %1090, %v74
    %v1092 = vpop.permute.xlu0 %1091
    %v1094 = vadd.f32 %v998, %v1017
    %v1095 = vadd.f32 %v999, %v1022
    %v1096 = vadd.f32 %v1000, %v1027
    %v1097 = vadd.f32 %v1001, %v1032
    %v1098 = vadd.f32 %v1002, %v1037
    %v1099 = vadd.f32 %v1003, %v1042
    %v1100 = vadd.f32 %v1004, %v1047
    %v1101 = vadd.f32 %v1005, %v1052
    %v1102 = vadd.f32 %v1006, %v1057
    %v1103 = vadd.f32 %v1007, %v1062
    %v1104 = vadd.f32 %v1008, %v1067
    %v1105 = vadd.f32 %v1009, %v1072
    %v1106 = vadd.f32 %v1010, %v1077
    %v1107 = vadd.f32 %v1011, %v1082
    %v1108 = vadd.f32 %v1012, %v1087
    %v1109 = vadd.f32 %v1013, %v1092
    %v1110 = vmax.f32 %v1094, 0.0
    %v1111 = vmax.f32 %v1095, 0.0
    %v1112 = vmax.f32 %v1096, 0.0
    %v1113 = vmax.f32 %v1097, 0.0
    %v1114 = vmax.f32 %v1098, 0.0
    %v1115 = vmax.f32 %v1099, 0.0
    %v1116 = vmax.f32 %v1100, 0.0
    %v1117 = vmax.f32 %v1101, 0.0
    %v1118 = vmax.f32 %v1102, 0.0
    %v1119 = vmax.f32 %v1103, 0.0
    %v1120 = vmax.f32 %v1104, 0.0
    %v1121 = vmax.f32 %v1105, 0.0
    %v1122 = vmax.f32 %v1106, 0.0
    %v1123 = vmax.f32 %v1107, 0.0
    %v1124 = vmax.f32 %v1108, 0.0
    %v1125 = vmax.f32 %v1109, 0.0
    %v1126 = vld [vmem:[%s1 + $0x80] sm:$0xff]
    %v1127 = vld [vmem:[%s1 + $0x88] sm:$0xff]
    %v1128 = vld [vmem:[%s1 + $0x90] sm:$0xff]
    %v1129 = vld [vmem:[%s1 + $0x98] sm:$0xff]
    %1130 = vmatprep.subr.mxu0 0.0
    %1131 = vmatpush1.msra.mxu0 %v1110
    %1132 = vmatprep.subr.mxu0 0.0
    %1133 = vmatpush1.msra.mxu0 %v1111
    %1134 = vmatprep.subr.mxu0 0.0
    %1135 = vmatpush1.msra.mxu0 %v1112
    %1136 = vmatprep.subr.mxu0 0.0
    %1137 = vmatpush1.msra.mxu0 %v1113
    %1138 = vmatprep.subr.mxu0 0.0
    %1139 = vmatpush1.msra.mxu0 %v1114
    %1140 = vmatprep.subr.mxu0 0.0
    %1141 = vmatpush1.msra.mxu0 %v1115
    %1142 = vmatprep.subr.mxu0 0.0
    %1143 = vmatpush1.msra.mxu0 %v1116
    %1144 = vmatprep.subr.mxu0 0.0
    %1145 = vmatpush1.msra.mxu0 %v1117
    %1146 = vmatprep.subr.mxu0 0.0
    %1147 = vmatpush1.msra.mxu0 %v1118
    %1148 = vmatprep.subr.mxu0 0.0
    %1149 = vmatpush1.msra.mxu0 %v1119
    %1150 = vmatprep.subr.mxu0 0.0
    %1151 = vmatpush1.msra.mxu0 %v1120
    %1152 = vmatprep.subr.mxu0 0.0
    %1153 = vmatpush1.msra.mxu0 %v1121
    %1154 = vmatprep.subr.mxu0 0.0
    %1155 = vmatpush1.msra.mxu0 %v1122
    %1156 = vmatprep.subr.mxu0 0.0
    %1157 = vmatpush1.msra.mxu0 %v1123
    %1158 = vmatprep.subr.mxu0 0.0
    %1159 = vmatpush1.msra.mxu0 %v1124
    %1160 = vmatprep.subr.mxu0 0.0
    %1161 = vmatpush1.msra.mxu0 %v1125
    %1162 = vmatprep.subr.mxu0 0.0
    %1163 = vmatpush1.msra.mxu0 0.0
    %1164 = vmatprep.subr.mxu0 0.0
    %1165 = vmatpush1.msra.mxu0 0.0
    %1166 = vmatprep.subr.mxu0 0.0
    %1167 = vmatpush1.msra.mxu0 0.0
    %1168 = vmatprep.subr.mxu0 0.0
    %1169 = vmatpush1.msra.mxu0 0.0
    %1170 = vmatprep.subr.mxu0 0.0
    %1171 = vmatpush1.msra.mxu0 0.0
    %1172 = vmatprep.subr.mxu0 0.0
    %1173 = vmatpush1.msra.mxu0 0.0
    %1174 = vmatprep.subr.mxu0 0.0
    %1175 = vmatpush1.msra.mxu0 0.0
    %1176 = vmatprep.subr.mxu0 0.0
    %1177 = vmatpush1.msra.mxu0 0.0
    %1178 = vmatprep.subr.mxu0 0.0
    %1179 = vmatpush1.msra.mxu0 0.0
    %1180 = vmatprep.subr.mxu0 0.0
    %1181 = vmatpush1.msra.mxu0 0.0
    %1182 = vmatprep.subr.mxu0 0.0
    %1183 = vmatpush1.msra.mxu0 0.0
    %1184 = vmatprep.subr.mxu0 0.0
    %1185 = vmatpush1.msra.mxu0 0.0
    %1186 = vmatprep.subr.mxu0 0.0
    %1187 = vmatpush1.msra.mxu0 0.0
    %1188 = vmatprep.subr.mxu0 0.0
    %1189 = vmatpush1.msra.mxu0 0.0
    %1190 = vmatprep.subr.mxu0 0.0
    %1191 = vmatpush1.msra.mxu0 0.0
    %1192 = vmatprep.subr.mxu0 0.0
    %1193 = vmatpush1.msra.mxu0 0.0
    %1194 = vmatprep.mubr.f32.mxu0 0.0
    %1195 = vmatmul.mubr.f32.gmra.mrb[0].mxu0 %v34
    %v1196 = vpop.f32.mrb[0].mxu0
    %v1197 = vadd.f32 0.0, %v1196
    %v1198 = vpop.f32.mrb[0].mxu0
    %1199 = vmatprep.mubr.f32.mxu0 0.0
    %1200 = vmatmul.mubr.f32.gmra.mrb[0].mxu0 %v35
    %v1201 = vpop.f32.mrb[0].mxu0
    %v1202 = vadd.f32 0.0, %v1201
    %v1203 = vpop.f32.mrb[0].mxu0
    %1204 = vmatprep.mubr.f32.mxu0 0.0
    %1205 = vmatmul.mubr.f32.gmra.mrb[0].mxu0 %v36
    %v1206 = vpop.f32.mrb[0].mxu0
    %v1207 = vadd.f32 0.0, %v1206
    %v1208 = vpop.f32.mrb[0].mxu0
    %1209 = vmatprep.mubr.f32.mxu0 0.0
    %1210 = vmatmul.mubr.f32.gmra.mrb[0].mxu0 %v37
    %v1211 = vpop.f32.mrb[0].mxu0
    %v1212 = vadd.f32 0.0, %v1211
    %v1213 = vpop.f32.mrb[0].mxu0
    %1214 = vmatprep.mubr.f32.mxu0 0.0
    %1215 = vmatmul.mubr.f32.gmra.mrb[0].mxu0 %v38
    %v1216 = vpop.f32.mrb[0].mxu0
    %v1217 = vadd.f32 0.0, %v1216
    %v1218 = vpop.f32.mrb[0].mxu0
    %1219 = vmatprep.mubr.f32.mxu0 0.0
    %1220 = vmatmul.mubr.f32.gmra.mrb[0].mxu0 %v39
    %v1221 = vpop.f32.mrb[0].mxu0
    %v1222 = vadd.f32 0.0, %v1221
    %v1223 = vpop.f32.mrb[0].mxu0
    %1224 = vmatprep.mubr.f32.mxu0 0.0
    %1225 = vmatmul.mubr.f32.gmra.mrb[0].mxu0 %v40
    %v1226 = vpop.f32.mrb[0].mxu0
    %v1227 = vadd.f32 0.0, %v1226
    %v1228 = vpop.f32.mrb[0].mxu0
    %1229 = vmatprep.mubr.f32.mxu0 0.0
    %1230 = vmatmul.mubr.f32.gmra.mrb[0].mxu0 %v41
    %v1231 = vpop.f32.mrb[0].mxu0
    %v1232 = vadd.f32 0.0, %v1231
    %v1233 = vpop.f32.mrb[0].mxu0
    %1234 = vmatprep.mubr.f32.mxu0 0.0
    %1235 = vmatmul.mubr.f32.gmra.mrb[0].mxu0 %v42
    %v1236 = vpop.f32.mrb[0].mxu0
    %v1237 = vadd.f32 0.0, %v1236
    %v1238 = vpop.f32.mrb[0].mxu0
    %1239 = vmatprep.mubr.f32.mxu0 0.0
    %1240 = vmatmul.mubr.f32.gmra.mrb[0].mxu0 %v43
    %v1241 = vpop.f32.mrb[0].mxu0
    %v1242 = vadd.f32 0.0, %v1241
    %v1243 = vpop.f32.mrb[0].mxu0
    %1244 = vmatprep.mubr.f32.mxu0 0.0
    %1245 = vmatmul.mubr.f32.gmra.mrb[0].mxu0 %v44
    %v1246 = vpop.f32.mrb[0].mxu0
    %v1247 = vadd.f32 0.0, %v1246
    %v1248 = vpop.f32.mrb[0].mxu0
    %1249 = vmatprep.mubr.f32.mxu0 0.0
    %1250 = vmatmul.mubr.f32.gmra.mrb[0].mxu0 %v45
    %v1251 = vpop.f32.mrb[0].mxu0
    %v1252 = vadd.f32 0.0, %v1251
    %v1253 = vpop.f32.mrb[0].mxu0
    %1254 = vmatprep.mubr.f32.mxu0 0.0
    %1255 = vmatmul.mubr.f32.gmra.mrb[0].mxu0 %v46
    %v1256 = vpop.f32.mrb[0].mxu0
    %v1257 = vadd.f32 0.0, %v1256
    %v1258 = vpop.f32.mrb[0].mxu0
    %1259 = vmatprep.mubr.f32.mxu0 0.0
    %1260 = vmatmul.mubr.f32.gmra.mrb[0].mxu0 %v47
    %v1261 = vpop.f32.mrb[0].mxu0
    %v1262 = vadd.f32 0.0, %v1261
    %v1263 = vpop.f32.mrb[0].mxu0
    %1264 = vmatprep.mubr.f32.mxu0 0.0
    %1265 = vmatmul.mubr.f32.gmra.mrb[0].mxu0 %v48
    %v1266 = vpop.f32.mrb[0].mxu0
    %v1267 = vadd.f32 0.0, %v1266
    %v1268 = vpop.f32.mrb[0].mxu0
    %1269 = vmatprep.mubr.f32.mxu0 0.0
    %1270 = vmatmul.mubr.f32.gmra.mrb[0].mxu0 %v49
    %v1271 = vpop.f32.mrb[0].mxu0
    %v1272 = vadd.f32 0.0, %v1271
    %v1273 = vpop.f32.mrb[0].mxu0
    %1274 = vdwg.mxu0
    %v1275 = vld [vmem:[%s1 + $0xa0] sm:$0xff]
    %v1276 = vld [vmem:[%s1 + $0xa8] sm:$0xff]
    %v1277 = vld [vmem:[%s1 + $0xb0] sm:$0xff]
    %v1278 = vld [vmem:[%s1 + $0xb8] sm:$0xff]
    %1279 = vmatprep.subr.mxu0 0.0
    %1280 = vmatpush1.msra.mxu0 %v1197
    %1281 = vmatprep.subr.mxu0 0.0
    %1282 = vmatpush1.msra.mxu0 %v1202
    %1283 = vmatprep.subr.mxu0 0.0
    %1284 = vmatpush1.msra.mxu0 %v1207
    %1285 = vmatprep.subr.mxu0 0.0
    %1286 = vmatpush1.msra.mxu0 %v1212
    %1287 = vmatprep.subr.mxu0 0.0
    %1288 = vmatpush1.msra.mxu0 %v1217
    %1289 = vmatprep.subr.mxu0 0.0
    %1290 = vmatpush1.msra.mxu0 %v1222
    %1291 = vmatprep.subr.mxu0 0.0
    %1292 = vmatpush1.msra.mxu0 %v1227
    %1293 = vmatprep.subr.mxu0 0.0
    %1294 = vmatpush1.msra.mxu0 %v1232
    %1295 = vmatprep.subr.mxu0 0.0
    %1296 = vmatpush1.msra.mxu0 %v1237
    %1297 = vmatprep.subr.mxu0 0.0
    %1298 = vmatpush1.msra.mxu0 %v1242
    %1299 = vmatprep.subr.mxu0 0.0
    %1300 = vmatpush1.msra.mxu0 %v1247
    %1301 = vmatprep.subr.mxu0 0.0
    %1302 = vmatpush1.msra.mxu0 %v1252
    %1303 = vmatprep.subr.mxu0 0.0
    %1304 = vmatpush1.msra.mxu0 %v1257
    %1305 = vmatprep.subr.mxu0 0.0
    %1306 = vmatpush1.msra.mxu0 %v1262
    %1307 = vmatprep.subr.mxu0 0.0
    %1308 = vmatpush1.msra.mxu0 %v1267
    %1309 = vmatprep.subr.mxu0 0.0
    %1310 = vmatpush1.msra.mxu0 %v1272
    %1311 = vmatprep.subr.mxu0 0.0
    %1312 = vmatpush1.msra.mxu0 0.0
    %1313 = vmatprep.subr.mxu0 0.0
    %1314 = vmatpush1.msra.mxu0 0.0
    %1315 = vmatprep.subr.mxu0 0.0
    %1316 = vmatpush1.msra.mxu0 0.0
    %1317 = vmatprep.subr.mxu0 0.0
    %1318 = vmatpush1.msra.mxu0 0.0
    %1319 = vmatprep.subr.mxu0 0.0
    %1320 = vmatpush1.msra.mxu0 0.0
    %1321 = vmatprep.subr.mxu0 0.0
    %1322 = vmatpush1.msra.mxu0 0.0
    %1323 = vmatprep.subr.mxu0 0.0
    %1324 = vmatpush1.msra.mxu0 0.0
    %1325 = vmatprep.subr.mxu0 0.0
    %1326 = vmatpush1.msra.mxu0 0.0
    %1327 = vmatprep.subr.mxu0 0.0
    %1328 = vmatpush1.msra.mxu0 0.0
    %1329 = vmatprep.subr.mxu0 0.0
    %1330 = vmatpush1.msra.mxu0 0.0
    %1331 = vmatprep.subr.mxu0 0.0
    %1332 = vmatpush1.msra.mxu0 0.0
    %1333 = vmatprep.subr.mxu0 0.0
    %1334 = vmatpush1.msra.mxu0 0.0
    %1335 = vmatprep.subr.mxu0 0.0
    %1336 = vmatpush1.msra.mxu0 0.0
    %1337 = vmatprep.subr.mxu0 0.0
    %1338 = vmatpush1.msra.mxu0 0.0
    %1339 = vmatprep.subr.mxu0 0.0
    %1340 = vmatpush1.msra.mxu0 0.0
    %1341 = vmatprep.subr.mxu0 0.0
    %1342 = vmatpush1.msra.mxu0 0.0
    %1343 = vmatprep.mubr.f32.mxu0 0.0
    %1344 = vmatmul.mubr.f32.gmra.mrb[0].mxu0 %v1275
    %v1345 = vpop.f32.mrb[0].mxu0
    %v1346 = vadd.f32 0.0, %v1345
    %v1347 = vpop.f32.mrb[0].mxu0
    %1348 = vmatprep.mubr.f32.mxu0 0.0
    %1349 = vmatmul.mubr.f32.gmra.mrb[0].mxu0 %v1276
    %v1350 = vpop.f32.mrb[0].mxu0
    %v1351 = vadd.f32 0.0, %v1350
    %v1352 = vpop.f32.mrb[0].mxu0
    %1353 = vmatprep.mubr.f32.mxu0 0.0
    %1354 = vmatmul.mubr.f32.gmra.mrb[0].mxu0 %v1277
    %v1355 = vpop.f32.mrb[0].mxu0
    %v1356 = vadd.f32 0.0, %v1355
    %v1357 = vpop.f32.mrb[0].mxu0
    %1358 = vmatprep.mubr.f32.mxu0 0.0
    %1359 = vmatmul.mubr.f32.gmra.mrb[0].mxu0 %v1278
    %v1360 = vpop.f32.mrb[0].mxu0
    %v1361 = vadd.f32 0.0, %v1360
    %v1362 = vpop.f32.mrb[0].mxu0
    %1363 = vdwg.mxu0
    %1364 = vmatprep.subr.mxu0 0.0
    %1365 = vmatpush1.msra.mxu0 %v1110
    %1366 = vmatprep.subr.mxu0 0.0
    %1367 = vmatpush1.msra.mxu0 %v1111
    %1368 = vmatprep.subr.mxu0 0.0
    %1369 = vmatpush1.msra.mxu0 %v1112
    %1370 = vmatprep.subr.mxu0 0.0
    %1371 = vmatpush1.msra.mxu0 %v1113
    %1372 = vmatprep.subr.mxu0 0.0
    %1373 = vmatpush1.msra.mxu0 %v1114
    %1374 = vmatprep.subr.mxu0 0.0
    %1375 = vmatpush1.msra.mxu0 %v1115
    %1376 = vmatprep.subr.mxu0 0.0
    %1377 = vmatpush1.msra.mxu0 %v1116
    %1378 = vmatprep.subr.mxu0 0.0
    %1379 = vmatpush1.msra.mxu0 %v1117
    %1380 = vmatprep.subr.mxu0 0.0
    %1381 = vmatpush1.msra.mxu0 %v1118
    %1382 = vmatprep.subr.mxu0 0.0
    %1383 = vmatpush1.msra.mxu0 %v1119
    %1384 = vmatprep.subr.mxu0 0.0
    %1385 = vmatpush1.msra.mxu0 %v1120
    %1386 = vmatprep.subr.mxu0 0.0
    %1387 = vmatpush1.msra.mxu0 %v1121
    %1388 = vmatprep.subr.mxu0 0.0
    %1389 = vmatpush1.msra.mxu0 %v1122
    %1390 = vmatprep.subr.mxu0 0.0
    %1391 = vmatpush1.msra.mxu0 %v1123
    %1392 = vmatprep.subr.mxu0 0.0
    %1393 = vmatpush1.msra.mxu0 %v1124
    %1394 = vmatprep.subr.mxu0 0.0
    %1395 = vmatpush1.msra.mxu0 %v1125
    %1396 = vmatprep.subr.mxu0 0.0
    %1397 = vmatpush1.msra.mxu0 0.0
    %1398 = vmatprep.subr.mxu0 0.0
    %1399 = vmatpush1.msra.mxu0 0.0
    %1400 = vmatprep.subr.mxu0 0.0
    %1401 = vmatpush1.msra.mxu0 0.0
    %1402 = vmatprep.subr.mxu0 0.0
    %1403 = vmatpush1.msra.mxu0 0.0
    %1404 = vmatprep.subr.mxu0 0.0
    %1405 = vmatpush1.msra.mxu0 0.0
    %1406 = vmatprep.subr.mxu0 0.0
    %1407 = vmatpush1.msra.mxu0 0.0
    %1408 = vmatprep.subr.mxu0 0.0
    %1409 = vmatpush1.msra.mxu0 0.0
    %1410 = vmatprep.subr.mxu0 0.0
    %1411 = vmatpush1.msra.mxu0 0.0
    %1412 = vmatprep.subr.mxu0 0.0
    %1413 = vmatpush1.msra.mxu0 0.0
    %1414 = vmatprep.subr.mxu0 0.0
    %1415 = vmatpush1.msra.mxu0 0.0
    %1416 = vmatprep.subr.mxu0 0.0
    %1417 = vmatpush1.msra.mxu0 0.0
    %1418 = vmatprep.subr.mxu0 0.0
    %1419 = vmatpush1.msra.mxu0 0.0
    %1420 = vmatprep.subr.mxu0 0.0
    %1421 = vmatpush1.msra.mxu0 0.0
    %1422 = vmatprep.subr.mxu0 0.0
    %1423 = vmatpush1.msra.mxu0 0.0
    %1424 = vmatprep.subr.mxu0 0.0
    %1425 = vmatpush1.msra.mxu0 0.0
    %1426 = vmatprep.subr.mxu0 0.0
    %1427 = vmatpush1.msra.mxu0 0.0
    %1428 = vmatprep.mubr.f32.mxu0 0.0
    %1429 = vmatmul.mubr.f32.gmra.mrb[0].mxu0 %v1126
    %v1430 = vpop.f32.mrb[0].mxu0
    %v1431 = vadd.f32 %v1346, %v1430
    %v1432 = vpop.f32.mrb[0].mxu0
    %1433 = vmatprep.mubr.f32.mxu0 0.0
    %1434 = vmatmul.mubr.f32.gmra.mrb[0].mxu0 %v1127
    %v1435 = vpop.f32.mrb[0].mxu0
    %v1436 = vadd.f32 %v1351, %v1435
    %v1437 = vpop.f32.mrb[0].mxu0
    %1438 = vmatprep.mubr.f32.mxu0 0.0
    %1439 = vmatmul.mubr.f32.gmra.mrb[0].mxu0 %v1128
    %v1440 = vpop.f32.mrb[0].mxu0
    %v1441 = vadd.f32 %v1356, %v1440
    %v1442 = vpop.f32.mrb[0].mxu0
    %1443 = vmatprep.mubr.f32.mxu0 0.0
    %1444 = vmatmul.mubr.f32.gmra.mrb[0].mxu0 %v1129
    %v1445 = vpop.f32.mrb[0].mxu0
    %v1446 = vadd.f32 %v1361, %v1445
    %v1447 = vpop.f32.mrb[0].mxu0
    %1448 = vdwg.mxu0
    %1449 = vmatprep.subr.mxu0 0.0
    %1450 = vmatpush1.msra.mxu0 %v1197
    %1451 = vmatprep.subr.mxu0 0.0
    %1452 = vmatpush1.msra.mxu0 %v1202
    %1453 = vmatprep.subr.mxu0 0.0
    %1454 = vmatpush1.msra.mxu0 %v1207
    %1455 = vmatprep.subr.mxu0 0.0
    %1456 = vmatpush1.msra.mxu0 %v1212
    %1457 = vmatprep.subr.mxu0 0.0
    %1458 = vmatpush1.msra.mxu0 %v1217
    %1459 = vmatprep.subr.mxu0 0.0
    %1460 = vmatpush1.msra.mxu0 %v1222
    %1461 = vmatprep.subr.mxu0 0.0
    %1462 = vmatpush1.msra.mxu0 %v1227
    %1463 = vmatprep.subr.mxu0 0.0
    %1464 = vmatpush1.msra.mxu0 %v1232
    %1465 = vmatprep.subr.mxu0 0.0
    %1466 = vmatpush1.msra.mxu0 %v1237
    %1467 = vmatprep.subr.mxu0 0.0
    %1468 = vmatpush1.msra.mxu0 %v1242
    %1469 = vmatprep.subr.mxu0 0.0
    %1470 = vmatpush1.msra.mxu0 %v1247
    %1471 = vmatprep.subr.mxu0 0.0
    %1472 = vmatpush1.msra.mxu0 %v1252
    %1473 = vmatprep.subr.mxu0 0.0
    %1474 = vmatpush1.msra.mxu0 %v1257
    %1475 = vmatprep.subr.mxu0 0.0
    %1476 = vmatpush1.msra.mxu0 %v1262
    %1477 = vmatprep.subr.mxu0 0.0
    %1478 = vmatpush1.msra.mxu0 %v1267
    %1479 = vmatprep.subr.mxu0 0.0
    %1480 = vmatpush1.msra.mxu0 %v1272
    %1481 = vmatprep.subr.mxu0 0.0
    %1482 = vmatpush1.msra.mxu0 0.0
    %1483 = vmatprep.subr.mxu0 0.0
    %1484 = vmatpush1.msra.mxu0 0.0
    %1485 = vmatprep.subr.mxu0 0.0
    %1486 = vmatpush1.msra.mxu0 0.0
    %1487 = vmatprep.subr.mxu0 0.0
    %1488 = vmatpush1.msra.mxu0 0.0
    %1489 = vmatprep.subr.mxu0 0.0
    %1490 = vmatpush1.msra.mxu0 0.0
    %1491 = vmatprep.subr.mxu0 0.0
    %1492 = vmatpush1.msra.mxu0 0.0
    %1493 = vmatprep.subr.mxu0 0.0
    %1494 = vmatpush1.msra.mxu0 0.0
    %1495 = vmatprep.subr.mxu0 0.0
    %1496 = vmatpush1.msra.mxu0 0.0
    %1497 = vmatprep.subr.mxu0 0.0
    %1498 = vmatpush1.msra.mxu0 0.0
    %1499 = vmatprep.subr.mxu0 0.0
    %1500 = vmatpush1.msra.mxu0 0.0
    %1501 = vmatprep.subr.mxu0 0.0
    %1502 = vmatpush1.msra.mxu0 0.0
    %1503 = vmatprep.subr.mxu0 0.0
    %1504 = vmatpush1.msra.mxu0 0.0
    %1505 = vmatprep.subr.mxu0 0.0
    %1506 = vmatpush1.msra.mxu0 0.0
    %1507 = vmatprep.subr.mxu0 0.0
    %1508 = vmatpush1.msra.mxu0 0.0
    %1509 = vmatprep.subr.mxu0 0.0
    %1510 = vmatpush1.msra.mxu0 0.0
    %1511 = vmatprep.subr.mxu0 0.0
    %1512 = vmatpush1.msra.mxu0 0.0
    %1513 = vmatprep.mubr.f32.mxu0 0.0
    %1514 = vmatmul.mubr.f32.gmra.mrb[0].mxu0 %v34
    %v1515 = vpop.f32.mrb[0].mxu0
    %v1516 = vadd.f32 0.0, %v1515
    %v1517 = vpop.f32.mrb[0].mxu0
    %1518 = vmatprep.mubr.f32.mxu0 0.0
    %1519 = vmatmul.mubr.f32.gmra.mrb[0].mxu0 %v35
    %v1520 = vpop.f32.mrb[0].mxu0
    %v1521 = vadd.f32 0.0, %v1520
    %v1522 = vpop.f32.mrb[0].mxu0
    %1523 = vmatprep.mubr.f32.mxu0 0.0
    %1524 = vmatmul.mubr.f32.gmra.mrb[0].mxu0 %v36
    %v1525 = vpop.f32.mrb[0].mxu0
    %v1526 = vadd.f32 0.0, %v1525
    %v1527 = vpop.f32.mrb[0].mxu0
    %1528 = vmatprep.mubr.f32.mxu0 0.0
    %1529 = vmatmul.mubr.f32.gmra.mrb[0].mxu0 %v37
    %v1530 = vpop.f32.mrb[0].mxu0
    %v1531 = vadd.f32 0.0, %v1530
    %v1532 = vpop.f32.mrb[0].mxu0
    %1533 = vmatprep.mubr.f32.mxu0 0.0
    %1534 = vmatmul.mubr.f32.gmra.mrb[0].mxu0 %v38
    %v1535 = vpop.f32.mrb[0].mxu0
    %v1536 = vadd.f32 0.0, %v1535
    %v1537 = vpop.f32.mrb[0].mxu0
    %1538 = vmatprep.mubr.f32.mxu0 0.0
    %1539 = vmatmul.mubr.f32.gmra.mrb[0].mxu0 %v39
    %v1540 = vpop.f32.mrb[0].mxu0
    %v1541 = vadd.f32 0.0, %v1540
    %v1542 = vpop.f32.mrb[0].mxu0
    %1543 = vmatprep.mubr.f32.mxu0 0.0
    %1544 = vmatmul.mubr.f32.gmra.mrb[0].mxu0 %v40
    %v1545 = vpop.f32.mrb[0].mxu0
    %v1546 = vadd.f32 0.0, %v1545
    %v1547 = vpop.f32.mrb[0].mxu0
    %1548 = vmatprep.mubr.f32.mxu0 0.0
    %1549 = vmatmul.mubr.f32.gmra.mrb[0].mxu0 %v41
    %v1550 = vpop.f32.mrb[0].mxu0
    %v1551 = vadd.f32 0.0, %v1550
    %v1552 = vpop.f32.mrb[0].mxu0
    %1553 = vmatprep.mubr.f32.mxu0 0.0
    %1554 = vmatmul.mubr.f32.gmra.mrb[0].mxu0 %v42
    %v1555 = vpop.f32.mrb[0].mxu0
    %v1556 = vadd.f32 0.0, %v1555
    %v1557 = vpop.f32.mrb[0].mxu0
    %1558 = vmatprep.mubr.f32.mxu0 0.0
    %1559 = vmatmul.mubr.f32.gmra.mrb[0].mxu0 %v43
    %v1560 = vpop.f32.mrb[0].mxu0
    %v1561 = vadd.f32 0.0, %v1560
    %v1562 = vpop.f32.mrb[0].mxu0
    %1563 = vmatprep.mubr.f32.mxu0 0.0
    %1564 = vmatmul.mubr.f32.gmra.mrb[0].mxu0 %v44
    %v1565 = vpop.f32.mrb[0].mxu0
    %v1566 = vadd.f32 0.0, %v1565
    %v1567 = vpop.f32.mrb[0].mxu0
    %1568 = vmatprep.mubr.f32.mxu0 0.0
    %1569 = vmatmul.mubr.f32.gmra.mrb[0].mxu0 %v45
    %v1570 = vpop.f32.mrb[0].mxu0
    %v1571 = vadd.f32 0.0, %v1570
    %v1572 = vpop.f32.mrb[0].mxu0
    %1573 = vmatprep.mubr.f32.mxu0 0.0
    %1574 = vmatmul.mubr.f32.gmra.mrb[0].mxu0 %v46
    %v1575 = vpop.f32.mrb[0].mxu0
    %v1576 = vadd.f32 0.0, %v1575
    %v1577 = vpop.f32.mrb[0].mxu0
    %1578 = vmatprep.mubr.f32.mxu0 0.0
    %1579 = vmatmul.mubr.f32.gmra.mrb[0].mxu0 %v47
    %v1580 = vpop.f32.mrb[0].mxu0
    %v1581 = vadd.f32 0.0, %v1580
    %v1582 = vpop.f32.mrb[0].mxu0
    %1583 = vmatprep.mubr.f32.mxu0 0.0
    %1584 = vmatmul.mubr.f32.gmra.mrb[0].mxu0 %v48
    %v1585 = vpop.f32.mrb[0].mxu0
    %v1586 = vadd.f32 0.0, %v1585
    %v1587 = vpop.f32.mrb[0].mxu0
    %1588 = vmatprep.mubr.f32.mxu0 0.0
    %1589 = vmatmul.mubr.f32.gmra.mrb[0].mxu0 %v49
    %v1590 = vpop.f32.mrb[0].mxu0
    %v1591 = vadd.f32 0.0, %v1590
    %v1592 = vpop.f32.mrb[0].mxu0
    %1593 = vdwg.mxu0
    %v1594 = vmul.f32 %v1516, 2.0
    %v1595 = vmul.f32 %v1521, 2.0
    %v1596 = vmul.f32 %v1526, 2.0
    %v1597 = vmul.f32 %v1531, 2.0
    %v1598 = vmul.f32 %v1536, 2.0
    %v1599 = vmul.f32 %v1541, 2.0
    %v1600 = vmul.f32 %v1546, 2.0
    %v1601 = vmul.f32 %v1551, 2.0
    %v1602 = vmul.f32 %v1556, 2.0
    %v1603 = vmul.f32 %v1561, 2.0
    %v1604 = vmul.f32 %v1566, 2.0
    %v1605 = vmul.f32 %v1571, 2.0
    %v1606 = vmul.f32 %v1576, 2.0
    %v1607 = vmul.f32 %v1581, 2.0
    %v1608 = vmul.f32 %v1586, 2.0
    %v1609 = vmul.f32 %v1591, 2.0
    %v1610 = vsub.f32 %v1594, %v1110
    %v1611 = vsub.f32 %v1595, %v1111
    %v1612 = vsub.f32 %v1596, %v1112
    %v1613 = vsub.f32 %v1597, %v1113
    %v1614 = vsub.f32 %v1598, %v1114
    %v1615 = vsub.f32 %v1599, %v1115
    %v1616 = vsub.f32 %v1600, %v1116
    %v1617 = vsub.f32 %v1601, %v1117
    %v1618 = vsub.f32 %v1602, %v1118
    %v1619 = vsub.f32 %v1603, %v1119
    %v1620 = vsub.f32 %v1604, %v1120
    %v1621 = vsub.f32 %v1605, %v1121
    %v1622 = vsub.f32 %v1606, %v1122
    %v1623 = vsub.f32 %v1607, %v1123
    %v1624 = vsub.f32 %v1608, %v1124
    %v1625 = vsub.f32 %v1609, %v1125
    %v1626 = vld [vmem:[%s1 + $0xc0] sm:$0xff]
    %v1627 = vld [vmem:[%s1 + $0xc8] sm:$0xff]
    %v1628 = vld [vmem:[%s1 + $0xd0] sm:$0xff]
    %v1629 = vld [vmem:[%s1 + $0xd8] sm:$0xff]
    %1630 = vmatprep.subr.mxu0 0.0
    %1631 = vmatpush1.msra.mxu0 %v1610
    %1632 = vmatprep.subr.mxu0 0.0
    %1633 = vmatpush1.msra.mxu0 %v1611
    %1634 = vmatprep.subr.mxu0 0.0
    %1635 = vmatpush1.msra.mxu0 %v1612
    %1636 = vmatprep.subr.mxu0 0.0
    %1637 = vmatpush1.msra.mxu0 %v1613
    %1638 = vmatprep.subr.mxu0 0.0
    %1639 = vmatpush1.msra.mxu0 %v1614
    %1640 = vmatprep.subr.mxu0 0.0
    %1641 = vmatpush1.msra.mxu0 %v1615
    %1642 = vmatprep.subr.mxu0 0.0
    %1643 = vmatpush1.msra.mxu0 %v1616
    %1644 = vmatprep.subr.mxu0 0.0
    %1645 = vmatpush1.msra.mxu0 %v1617
    %1646 = vmatprep.subr.mxu0 0.0
    %1647 = vmatpush1.msra.mxu0 %v1618
    %1648 = vmatprep.subr.mxu0 0.0
    %1649 = vmatpush1.msra.mxu0 %v1619
    %1650 = vmatprep.subr.mxu0 0.0
    %1651 = vmatpush1.msra.mxu0 %v1620
    %1652 = vmatprep.subr.mxu0 0.0
    %1653 = vmatpush1.msra.mxu0 %v1621
    %1654 = vmatprep.subr.mxu0 0.0
    %1655 = vmatpush1.msra.mxu0 %v1622
    %1656 = vmatprep.subr.mxu0 0.0
    %1657 = vmatpush1.msra.mxu0 %v1623
    %1658 = vmatprep.subr.mxu0 0.0
    %1659 = vmatpush1.msra.mxu0 %v1624
    %1660 = vmatprep.subr.mxu0 0.0
    %1661 = vmatpush1.msra.mxu0 %v1625
    %1662 = vmatprep.subr.mxu0 0.0
    %1663 = vmatpush1.msra.mxu0 0.0
    %1664 = vmatprep.subr.mxu0 0.0
    %1665 = vmatpush1.msra.mxu0 0.0
    %1666 = vmatprep.subr.mxu0 0.0
    %1667 = vmatpush1.msra.mxu0 0.0
    %1668 = vmatprep.subr.mxu0 0.0
    %1669 = vmatpush1.msra.mxu0 0.0
    %1670 = vmatprep.subr.mxu0 0.0
    %1671 = vmatpush1.msra.mxu0 0.0
    %1672 = vmatprep.subr.mxu0 0.0
    %1673 = vmatpush1.msra.mxu0 0.0
    %1674 = vmatprep.subr.mxu0 0.0
    %1675 = vmatpush1.msra.mxu0 0.0
    %1676 = vmatprep.subr.mxu0 0.0
    %1677 = vmatpush1.msra.mxu0 0.0
    %1678 = vmatprep.subr.mxu0 0.0
    %1679 = vmatpush1.msra.mxu0 0.0
    %1680 = vmatprep.subr.mxu0 0.0
    %1681 = vmatpush1.msra.mxu0 0.0
    %1682 = vmatprep.subr.mxu0 0.0
    %1683 = vmatpush1.msra.mxu0 0.0
    %1684 = vmatprep.subr.mxu0 0.0
    %1685 = vmatpush1.msra.mxu0 0.0
    %1686 = vmatprep.subr.mxu0 0.0
    %1687 = vmatpush1.msra.mxu0 0.0
    %1688 = vmatprep.subr.mxu0 0.0
    %1689 = vmatpush1.msra.mxu0 0.0
    %1690 = vmatprep.subr.mxu0 0.0
    %1691 = vmatpush1.msra.mxu0 0.0
    %1692 = vmatprep.subr.mxu0 0.0
    %1693 = vmatpush1.msra.mxu0 0.0
    %1694 = vmatprep.mubr.f32.mxu0 0.0
    %1695 = vmatmul.mubr.f32.gmra.mrb[0].mxu0 %v1626
    %v1696 = vpop.f32.mrb[0].mxu0
    %v1697 = vadd.f32 0.0, %v1696
    %v1698 = vpop.f32.mrb[0].mxu0
    %1699 = vmatprep.mubr.f32.mxu0 0.0
    %1700 = vmatmul.mubr.f32.gmra.mrb[0].mxu0 %v1627
    %v1701 = vpop.f32.mrb[0].mxu0
    %v1702 = vadd.f32 0.0, %v1701
    %v1703 = vpop.f32.mrb[0].mxu0
    %1704 = vmatprep.mubr.f32.mxu0 0.0
    %1705 = vmatmul.mubr.f32.gmra.mrb[0].mxu0 %v1628
    %v1706 = vpop.f32.mrb[0].mxu0
    %v1707 = vadd.f32 0.0, %v1706
    %v1708 = vpop.f32.mrb[0].mxu0
    %1709 = vmatprep.mubr.f32.mxu0 0.0
    %1710 = vmatmul.mubr.f32.gmra.mrb[0].mxu0 %v1629
    %v1711 = vpop.f32.mrb[0].mxu0
    %v1712 = vadd.f32 0.0, %v1711
    %v1713 = vpop.f32.mrb[0].mxu0
    %1714 = vdwg.mxu0
    %v1715 = vadd.f32 %v1431, %v1697
    %v1716 = vadd.f32 %v1436, %v1702
    %v1717 = vadd.f32 %v1441, %v1707
    %v1718 = vadd.f32 %v1446, %v1712
    %1720 = vset.pattern.permute.xlu0 0
    %1721 = vperm.xlu0 %1720, %v75
    %v1722 = vpop.permute.xlu0 %1721
    %1725 = vset.pattern.permute.xlu0 0
    %1726 = vperm.xlu0 %1725, %v76
    %v1727 = vpop.permute.xlu0 %1726
    %1730 = vset.pattern.permute.xlu0 0
    %1731 = vperm.xlu0 %1730, %v77
    %v1732 = vpop.permute.xlu0 %1731
    %1735 = vset.pattern.permute.xlu0 0
    %1736 = vperm.xlu0 %1735, %v78
    %v1737 = vpop.permute.xlu0 %1736
    %v1739 = vadd.f32 %v1715, %v1722
    %v1740 = vadd.f32 %v1716, %v1727
    %v1741 = vadd.f32 %v1717, %v1732
    %v1742 = vadd.f32 %v1718, %v1737
    %v1743 = vmax.f32 %v1741, %v1742
    %v1744 = vrot.slane %v1743, 4
    %v1745 = vmax.f32 %v1743, %v1744
    %v1746 = vrot.slane %v1745, 2
    %v1747 = vmax.f32 %v1745, %v1746
    %v1748 = vrot.slane %v1747, 1
    %v1749 = vmax.f32 %v1747, %v1748
    %v1750 = vmul.f32 %v1749, 3.5449078
    %s1751 = sld [smem:[#allocation3]]
    %v1752 = vstv %s1751
    %v1753 = vmul.f32 %v1739, %v1752
    %s1754 = sld [smem:[#allocation3 + $0x1]]
    %v1755 = vstv %s1754
    %v1756 = vmul.f32 %v1740, %v1755
    %v1757 = vadd.f32 %v1753, %v1756
    %s1758 = sld [smem:[#allocation2]]
    %v1759 = vstv %s1758
    %v1760 = vmul.f32 %v1750, %v1759
    %v1761 = vadd.f32 %v1757, %v1760
    %v1762 = vadd.f32 %v50, 1e-16
    %v1763 = vrcp.pop %v1762
    %v1764 = vmul.f32 %v1761, %v1763
    %v1765 = vmul.f32 %v1764, %v1764
    %v1766 = vadd.f32 %v1765, 1e-16
    %v1767 = vrsqrt.pop %v1766
    %v1768 = vlaneseq
    %v1769 = vshrl.u32 %v1768, 7
    %v1770 = vsub.s32 0, %v1769
    %v1771 = vrot.slane %v1767, %v1770
    %v1772 = vmul.f32 %v1739, %v1771
    %v1773 = vmul.f32 %v1740, %v1771
    %v1774 = vmul.f32 %v1750, %v1767
    %1775 = vst [vmem:[%s5] sm:$0xff] %v1772
    %1776 = vst [vmem:[%s5 + $0x8] sm:$0xff] %v1773
    %1777 = vst [vmem:[%s5 + $0x10] sm:$0x1] %v1774
    // Predicated region
    $region26: #{deconvolution_forward.1} parent=1 // pred_check
      _
    $region27: #{deconvolution_forward.1} parent=1 // pred_check_branch
      %1779 = sbr.rel (0) target = $region29
    $region28: #{deconvolution_forward.1} parent=1 // pred_region
      _
    $region29: #{deconvolution_forward.1} parent=1 // pred_fallthru
      _
    // Predicated region
    $region30: #{deconvolution_forward.1} parent=1 // pred_check
      _
    $region31: #{deconvolution_forward.1} parent=1 // pred_check_branch
      %1781 = sbr.rel (0) target = $region33
    $region32: #{deconvolution_forward.1} parent=1 // pred_region
      _
    $region33: #{deconvolution_forward.1} parent=1 // pred_fallthru
      _
    %1782 = vsyncpa [#allocation4], 1

</llo_original>
